<compile_context>
chip_gen: v6e
topology: v6e:2x2x1
jax: 0.10.0
libtpu: 0.0.40
codegen_flags: <defaults>
</compile_context>

<pallas_src>
import numpy as np
import jax
import jax.numpy as jnp
from jax.experimental import pallas as pl
from jax.experimental.pallas import tpu as pltpu

# ----------------------------- small config ---------------------------------
B = 2                     # batch
S = 16                    # sequence length
NHID = 32                 # args.bert_hidden_size
EXPAND = 0.258
SIZEFC1 = int(EXPAND * NHID)     # 8
SIZEFC2 = int(EXPAND * NHID)     # 8
NFILT = 2                 # conv out-channels per kernel size (see NOTE above)
KS = (3, 4, 5)            # conv kernel heights (Kim CNN)
KMAX = max(KS)            # 5 taps
NFEAT = len(KS) * NFILT   # 6 pooled conv features
N = 3                     # paths summed per layer (self.N)
M = 16                    # candidate modules per layer (self.M)
L_LAYERS = 2              # path-net depth (self.L)
TASKCLA = [(0, 5), (1, 5)]
NTASKS = len(TASKCLA)
NCLS = 5                  # classes per task (kept equal so heads stack)

LANES = 128
B_TILE = 8                                   # examples per grid step -> 128 rows
B_PAD = ((B + B_TILE - 1) // B_TILE) * B_TILE
ROWS = B_TILE * S                            # 128 rows of x per grid step


def _align8(v):
    return ((v + 7) // 8) * 8


# ------------------------- packed weight-slab layout -------------------------
R_CONVW = 0                                  # KMAX groups of NHID rows (per-tap conv W)
R_MASK = R_CONVW + KMAX * NHID               # 160: [S,128] 0/1 sequence-validity mask
R_CONVB = _align8(R_MASK + S)                # 176: conv bias row
R_FC1B = R_CONVB + 1                         # 177
R_FC2B = R_CONVB + 2                         # 178
R_LASTB = R_CONVB + 3                        # 179
R_FC1W = _align8(R_CONVB + 4)                # 184: 6 rows
R_FC2W = _align8(R_FC1W + NFEAT)             # 192: 8 rows
R_LASTW = _align8(R_FC2W + SIZEFC1)          # 200: 8 rows
R_SLAB = _align8(R_LASTW + SIZEFC2)          # 208


# ------------------------------ Pallas kernel --------------------------------
def pathnet_kernel(x_ref, slab_ref, out_ref):
    x = x_ref[...]                                           # [ROWS, NHID]

    # ---- conv: per-tap weight slabs, the sequence shift is a sublane roll ---
    # acc[r, 2*i+f] = sum_{dk<K[i]} x[r+dk, :] @ conv_w[i][f, dk, :]
    acc = jnp.dot(x, slab_ref[R_CONVW:R_CONVW + NHID, :],
                  preferred_element_type=jnp.float32)        # tap dk = 0
    for dk in range(1, KMAX):
        x_s = pltpu.roll(x, ROWS - dk, axis=0)               # x_s[r] = x[r + dk]
        w_dk = slab_ref[R_CONVW + dk * NHID:R_CONVW + (dk + 1) * NHID, :]
        acc = acc + jnp.dot(x_s, w_dk, preferred_element_type=jnp.float32)

    # bias + relu, zero-mask invalid sequence positions (safe post-relu),
    # then per-example max-pool over the sequence axis.
    conv = jnp.maximum(acc + slab_ref[R_CONVB:R_CONVB + 1, :], 0.0)
    conv = conv.reshape(B_TILE, S, LANES) * slab_ref[R_MASK:R_MASK + S, :][None, :, :]
    pooled = jnp.max(conv, axis=1)                           # [B_TILE,128]; lanes 0..5 live

    # ---- tiny fc chain on the VPU (broadcast-FMA), no MXU round trips -------
    def affine(h, w_base, n_in, b_row):
        z = slab_ref[b_row:b_row + 1, :]                     # [1,128] bias
        for j in range(n_in):                                # static unroll
            z = z + h[:, j:j + 1] * slab_ref[w_base + j:w_base + j + 1, :]
        return z                                             # [B_TILE,128]

    # fc1 over the N selected modules (lanes m*8..m*8+7), relu, sum over paths
    z1 = jnp.maximum(affine(pooled, R_FC1W, NFEAT, R_FC1B), 0.0)
    h1 = (z1 + pltpu.roll(z1, LANES - SIZEFC1, axis=1)
          + pltpu.roll(z1, LANES - 2 * SIZEFC1, axis=1))     # lanes 0..7 valid

    z2 = jnp.maximum(affine(h1, R_FC2W, SIZEFC1, R_FC2B), 0.0)
    h2 = (z2 + pltpu.roll(z2, LANES - SIZEFC2, axis=1)
          + pltpu.roll(z2, LANES - 2 * SIZEFC2, axis=1))     # lanes 0..7 valid

    # all task heads at once; lanes 0..9 = [task0 logits | task1 logits]
    out_ref[...] = affine(h2, R_LASTW, SIZEFC2, R_LASTB)


# ------------------------------ host wrapper ---------------------------------
def init_params(key):
    ks = jax.random.split(key, 12)

    def p(k, shape, scale=0.1):
        return jax.random.normal(k, shape, jnp.float32) * scale

    return {
        'conv_w': [p(ks[i], (NFILT, kk, NHID)) for i, kk in enumerate(KS)],
        'conv_b': [p(ks[3 + i], (1, NFILT)) for i in range(3)],
        # torch Linear layout: weight [out, in]
        'fc1_w': p(ks[6], (M, SIZEFC1, NFILT * 3)),
        'fc1_b': p(ks[7], (M, SIZEFC1)),
        'fc2_w': p(ks[8], (M, SIZEFC2, SIZEFC1)),
        'fc2_b': p(ks[9], (M, SIZEFC2)),
        'last_w': p(ks[10], (NTASKS, NCLS, SIZEFC2)),
        'last_b': p(ks[11], (NTASKS, NCLS)),
    }


def pack_operands(sequence_output, params, P):
    """Host-side packing: x (batch-padded, flattened) + ONE [208,128] slab."""
    p0 = np.asarray(P[0]) % M
    p1 = np.asarray(P[1]) % M

    # x: pad batch to B_PAD, flatten rows
    x = np.zeros((B_PAD, S, NHID), np.float32)
    x[:B] = np.asarray(sequence_output, np.float32)
    x_flat = jnp.asarray(x.reshape(B_PAD * S, NHID))

    slab = np.zeros((R_SLAB, LANES), np.float32)

    # per-tap conv weights: group dk, lane 2*i+f holds conv_w[i][f, dk, :]
    for dk in range(KMAX):
        for i, k in enumerate(KS):
            if dk >= k:
                continue
            w = np.asarray(params['conv_w'][i])                    # [F, k, H]
            for f in range(NFILT):
                slab[R_CONVW + dk * NHID:R_CONVW + (dk + 1) * NHID,
                     NFILT * i + f] = w[f, dk, :]

    # sequence-validity mask: position l valid for kernel k iff l <= S - k
    for i, k in enumerate(KS):
        for f in range(NFILT):
            slab[R_MASK:R_MASK + (S - k + 1), NFILT * i + f] = 1.0

    # conv bias row
    for i in range(len(KS)):
        slab[R_CONVB, NFILT * i:NFILT * (i + 1)] = \
            np.asarray(params['conv_b'][i]).reshape(NFILT)

    # fc1 / fc2: the N selected modules lane-concatenated (lane m*out + o)
    fc1w = np.asarray(params['fc1_w']); fc1b = np.asarray(params['fc1_b'])
    fc2w = np.asarray(params['fc2_w']); fc2b = np.asarray(params['fc2_b'])
    for m in range(N):
        slab[R_FC1W:R_FC1W + NFEAT, m * SIZEFC1:(m + 1) * SIZEFC1] = fc1w[p0[m]].T
        slab[R_FC1B, m * SIZEFC1:(m + 1) * SIZEFC1] = fc1b[p0[m]]
        slab[R_FC2W:R_FC2W + SIZEFC1, m * SIZEFC2:(m + 1) * SIZEFC2] = fc2w[p1[m]].T
        slab[R_FC2B, m * SIZEFC2:(m + 1) * SIZEFC2] = fc2b[p1[m]]

    # task heads stacked along lanes (lane t*NCLS + c)
    lastw = np.asarray(params['last_w']); lastb = np.asarray(params['last_b'])
    for t in range(NTASKS):
        slab[R_LASTW:R_LASTW + SIZEFC2, t * NCLS:(t + 1) * NCLS] = lastw[t].T
        slab[R_LASTB, t * NCLS:(t + 1) * NCLS] = lastb[t]

    return x_flat, jnp.asarray(slab)


def pathnet_forward(sequence_output, params, P):
    """P: int array [L_LAYERS, N] of module indices (negative wraps, as torch ModuleList)."""
    x_flat, slab = pack_operands(sequence_output, params, P)

    out = pl.pallas_call(
        pathnet_kernel,
        out_shape=jax.ShapeDtypeStruct((B_PAD, LANES), jnp.float32),
        grid=(B_PAD // B_TILE,),
        in_specs=[
            pl.BlockSpec((ROWS, NHID), lambda i: (i, 0)),          # x tile
            pl.BlockSpec((R_SLAB, LANES), lambda i: (0, 0)),       # weight slab (resident)
        ],
        out_specs=pl.BlockSpec((B_TILE, LANES), lambda i: (i, 0)),  # lane-dense logits
        compiler_params=pltpu.CompilerParams(
            dimension_semantics=("parallel",)),
    )(x_flat, slab)

    logits = out[:B, :NTASKS * NCLS]
    # same return convention as the torch module: list of per-task logits
    return [logits[:, t * NCLS:(t + 1) * NCLS] for t in range(NTASKS)]


# ------------------------- pure-JAX reference (check) ------------------------
def pathnet_reference(x, params, P):
    p0 = np.asarray(P[0]) % M
    p1 = np.asarray(P[1]) % M

    def conv_pool(w, b, k):
        lk = S - k + 1
        acc = jnp.zeros((B, lk, NFILT), jnp.float32)
        for dk in range(k):
            acc = acc + jnp.einsum('blh,fh->blf', x[:, dk:dk + lk, :], w[:, dk, :])
        acc = jnp.maximum(acc + b[:, None, :], 0.0)
        return jnp.max(acc, axis=1)

    pooled = [conv_pool(params['conv_w'][i], params['conv_b'][i], KS[i]) for i in range(3)]
    h_in = jnp.concatenate(pooled, axis=1)                         # [B, 6]

    h1 = jnp.zeros((B, SIZEFC1), jnp.float32)
    for j in range(N):
        h1 = h1 + jnp.maximum(h_in @ params['fc1_w'][p0[j]].T + params['fc1_b'][p0[j]], 0.0)
    h2 = jnp.zeros((B, SIZEFC2), jnp.float32)
    for j in range(N):
        h2 = h2 + jnp.maximum(h1 @ params['fc2_w'][p1[j]].T + params['fc2_b'][p1[j]], 0.0)
    return [h2 @ params['last_w'][t].T + params['last_b'][t] for t in range(NTASKS)]


if __name__ == "__main__":
    key = jax.random.PRNGKey(0)
    k_x, k_p = jax.random.split(key)

    # stand-in for BERT's frozen sequence_output  [B, S, H]
    sequence_output = jax.random.normal(k_x, (B, S, NHID), jnp.float32)
    params = init_params(k_p)

    # self.bestPath is initialized to -1 everywhere; forward(t=0, P=None)
    # therefore uses P = bestPath[0] = all -1 (indexes module M-1 in torch).
    bestPath = -1 * np.ones((NTASKS, L_LAYERS, N), dtype=np.int32)
    t = 0
    P = bestPath[t]

    y = pathnet_forward(sequence_output, params, P)
    y = [jax.block_until_ready(o) for o in y]

    y_ref = pathnet_reference(sequence_output, params, P)
    for a, b in zip(y, y_ref):
        np.testing.assert_allclose(np.asarray(a), np.asarray(b), rtol=1e-3, atol=1e-3)

    print("KERNEL_OK")
</pallas_src>

<mosaic_0001>
module attributes {stable_mosaic.version = 11 : i64} {
  func.func @pathnet_kernel(%arg0: i32, %arg1: memref<128x32xf32, #tpu.memory_space<vmem>>, %arg2: memref<208x128xf32, #tpu.memory_space<vmem>>, %arg3: memref<8x128xf32, #tpu.memory_space<vmem>>) attributes {dimension_semantics = [#tpu.dimension_semantics<parallel>], iteration_bounds = array<i64: 1>, scalar_prefetch = 0 : i64, scratch_operands = 0 : i64, tpu.core_type = #tpu.core_type<tc>, window_params = [{transform_indices = @transform_0, window_bounds = array<i64: 128, 32>}, {pipeline_mode = #tpu.pipeline_mode<synchronous>, transform_indices = @transform_1, window_bounds = array<i64: 208, 128>}, {transform_indices = @transform_2, window_bounds = array<i64: 8, 128>}]} {
    %c0 = arith.constant 0 : index
    %c0_0 = arith.constant 0 : index
    %0 = vector.load %arg1[%c0, %c0_0] : memref<128x32xf32, #tpu.memory_space<vmem>>, vector<128x32xf32>
    %c0_1 = arith.constant 0 : index
    %c0_2 = arith.constant 0 : index
    %1 = vector.load %arg2[%c0_1, %c0_2] : memref<208x128xf32, #tpu.memory_space<vmem>>, vector<32x128xf32>
    %cst = arith.constant dense<0.000000e+00> : vector<128x128xf32>
    %2 = tpu.matmul %0, %1, %cst {dimension_numbers = #tpu.dot_dimension_numbers<[1], [0], [0], [1], [0, 0, 1, 1], [], []>} : vector<128x32xf32>, vector<32x128xf32>, vector<128x128xf32> -> vector<128x128xf32>
    %c127_i32 = arith.constant 127 : i32
    %3 = tpu.dynamic_rotate %0 by %c127_i32 dim 0 : vector<128x32xf32>, i32 -> vector<128x32xf32>
    %c32 = arith.constant 32 : index
    %c0_3 = arith.constant 0 : index
    %4 = vector.load %arg2[%c32, %c0_3] : memref<208x128xf32, #tpu.memory_space<vmem>>, vector<32x128xf32>
    %cst_4 = arith.constant dense<0.000000e+00> : vector<128x128xf32>
    %5 = tpu.matmul %3, %4, %cst_4 {dimension_numbers = #tpu.dot_dimension_numbers<[1], [0], [0], [1], [0, 0, 1, 1], [], []>} : vector<128x32xf32>, vector<32x128xf32>, vector<128x128xf32> -> vector<128x128xf32>
    %6 = arith.addf %2, %5 : vector<128x128xf32>
    %c126_i32 = arith.constant 126 : i32
    %7 = tpu.dynamic_rotate %0 by %c126_i32 dim 0 : vector<128x32xf32>, i32 -> vector<128x32xf32>
    %c64 = arith.constant 64 : index
    %c0_5 = arith.constant 0 : index
    %8 = vector.load %arg2[%c64, %c0_5] : memref<208x128xf32, #tpu.memory_space<vmem>>, vector<32x128xf32>
    %cst_6 = arith.constant dense<0.000000e+00> : vector<128x128xf32>
    %9 = tpu.matmul %7, %8, %cst_6 {dimension_numbers = #tpu.dot_dimension_numbers<[1], [0], [0], [1], [0, 0, 1, 1], [], []>} : vector<128x32xf32>, vector<32x128xf32>, vector<128x128xf32> -> vector<128x128xf32>
    %10 = arith.addf %6, %9 : vector<128x128xf32>
    %c125_i32 = arith.constant 125 : i32
    %11 = tpu.dynamic_rotate %0 by %c125_i32 dim 0 : vector<128x32xf32>, i32 -> vector<128x32xf32>
    %c96 = arith.constant 96 : index
    %c0_7 = arith.constant 0 : index
    %12 = vector.load %arg2[%c96, %c0_7] : memref<208x128xf32, #tpu.memory_space<vmem>>, vector<32x128xf32>
    %cst_8 = arith.constant dense<0.000000e+00> : vector<128x128xf32>
    %13 = tpu.matmul %11, %12, %cst_8 {dimension_numbers = #tpu.dot_dimension_numbers<[1], [0], [0], [1], [0, 0, 1, 1], [], []>} : vector<128x32xf32>, vector<32x128xf32>, vector<128x128xf32> -> vector<128x128xf32>
    %14 = arith.addf %10, %13 : vector<128x128xf32>
    %c124_i32 = arith.constant 124 : i32
    %15 = tpu.dynamic_rotate %0 by %c124_i32 dim 0 : vector<128x32xf32>, i32 -> vector<128x32xf32>
    %c128 = arith.constant 128 : index
    %c0_9 = arith.constant 0 : index
    %16 = vector.load %arg2[%c128, %c0_9] : memref<208x128xf32, #tpu.memory_space<vmem>>, vector<32x128xf32>
    %cst_10 = arith.constant dense<0.000000e+00> : vector<128x128xf32>
    %17 = tpu.matmul %15, %16, %cst_10 {dimension_numbers = #tpu.dot_dimension_numbers<[1], [0], [0], [1], [0, 0, 1, 1], [], []>} : vector<128x32xf32>, vector<32x128xf32>, vector<128x128xf32> -> vector<128x128xf32>
    %18 = arith.addf %14, %17 : vector<128x128xf32>
    %c176 = arith.constant 176 : index
    %c0_11 = arith.constant 0 : index
    %19 = vector.load %arg2[%c176, %c0_11] : memref<208x128xf32, #tpu.memory_space<vmem>>, vector<1x128xf32>
    %20 = vector.broadcast %19 : vector<1x128xf32> to vector<128x128xf32>
    %21 = arith.addf %18, %20 : vector<128x128xf32>
    %cst_12 = arith.constant 0.000000e+00 : f32
    %22 = vector.broadcast %cst_12 : f32 to vector<128x128xf32>
    %23 = arith.maximumf %21, %22 : vector<128x128xf32>
    %24 = vector.shape_cast %23 : vector<128x128xf32> to vector<8x16x128xf32>
    %c160 = arith.constant 160 : index
    %c0_13 = arith.constant 0 : index
    %25 = vector.load %arg2[%c160, %c0_13] : memref<208x128xf32, #tpu.memory_space<vmem>>, vector<16x128xf32>
    %26 = vector.shape_cast %25 : vector<16x128xf32> to vector<1x16x128xf32>
    %27 = vector.broadcast %26 : vector<1x16x128xf32> to vector<8x16x128xf32>
    %28 = arith.mulf %24, %27 : vector<8x16x128xf32>
    %cst_14 = arith.constant dense<0xFF800000> : vector<8x128xf32>
    %29 = vector.multi_reduction <maximumf>, %28, %cst_14 [1] : vector<8x16x128xf32> to vector<8x128xf32>
    %c177 = arith.constant 177 : index
    %c0_15 = arith.constant 0 : index
    %30 = vector.load %arg2[%c177, %c0_15] : memref<208x128xf32, #tpu.memory_space<vmem>>, vector<1x128xf32>
    %31 = vector.extract_strided_slice %29 {offsets = [0, 0], sizes = [8, 1], strides = [1, 1]} : vector<8x128xf32> to vector<8x1xf32>
    %c184 = arith.constant 184 : index
    %c0_16 = arith.constant 0 : index
    %32 = vector.load %arg2[%c184, %c0_16] : memref<208x128xf32, #tpu.memory_space<vmem>>, vector<1x128xf32>
    %33 = vector.broadcast %31 : vector<8x1xf32> to vector<8x128xf32>
    %34 = vector.broadcast %32 : vector<1x128xf32> to vector<8x128xf32>
    %35 = arith.mulf %33, %34 : vector<8x128xf32>
    %36 = vector.broadcast %30 : vector<1x128xf32> to vector<8x128xf32>
    %37 = arith.addf %36, %35 : vector<8x128xf32>
    %38 = vector.extract_strided_slice %29 {offsets = [0, 1], sizes = [8, 1], strides = [1, 1]} : vector<8x128xf32> to vector<8x1xf32>
    %c185 = arith.constant 185 : index
    %c0_17 = arith.constant 0 : index
    %39 = vector.load %arg2[%c185, %c0_17] : memref<208x128xf32, #tpu.memory_space<vmem>>, vector<1x128xf32>
    %40 = vector.broadcast %38 : vector<8x1xf32> to vector<8x128xf32>
    %41 = vector.broadcast %39 : vector<1x128xf32> to vector<8x128xf32>
    %42 = arith.mulf %40, %41 : vector<8x128xf32>
    %43 = arith.addf %37, %42 : vector<8x128xf32>
    %44 = vector.extract_strided_slice %29 {offsets = [0, 2], sizes = [8, 1], strides = [1, 1]} : vector<8x128xf32> to vector<8x1xf32>
    %c186 = arith.constant 186 : index
    %c0_18 = arith.constant 0 : index
    %45 = vector.load %arg2[%c186, %c0_18] : memref<208x128xf32, #tpu.memory_space<vmem>>, vector<1x128xf32>
    %46 = vector.broadcast %44 : vector<8x1xf32> to vector<8x128xf32>
    %47 = vector.broadcast %45 : vector<1x128xf32> to vector<8x128xf32>
    %48 = arith.mulf %46, %47 : vector<8x128xf32>
    %49 = arith.addf %43, %48 : vector<8x128xf32>
    %50 = vector.extract_strided_slice %29 {offsets = [0, 3], sizes = [8, 1], strides = [1, 1]} : vector<8x128xf32> to vector<8x1xf32>
    %c187 = arith.constant 187 : index
    %c0_19 = arith.constant 0 : index
    %51 = vector.load %arg2[%c187, %c0_19] : memref<208x128xf32, #tpu.memory_space<vmem>>, vector<1x128xf32>
    %52 = vector.broadcast %50 : vector<8x1xf32> to vector<8x128xf32>
    %53 = vector.broadcast %51 : vector<1x128xf32> to vector<8x128xf32>
    %54 = arith.mulf %52, %53 : vector<8x128xf32>
    %55 = arith.addf %49, %54 : vector<8x128xf32>
    %56 = vector.extract_strided_slice %29 {offsets = [0, 4], sizes = [8, 1], strides = [1, 1]} : vector<8x128xf32> to vector<8x1xf32>
    %c188 = arith.constant 188 : index
    %c0_20 = arith.constant 0 : index
    %57 = vector.load %arg2[%c188, %c0_20] : memref<208x128xf32, #tpu.memory_space<vmem>>, vector<1x128xf32>
    %58 = vector.broadcast %56 : vector<8x1xf32> to vector<8x128xf32>
    %59 = vector.broadcast %57 : vector<1x128xf32> to vector<8x128xf32>
    %60 = arith.mulf %58, %59 : vector<8x128xf32>
    %61 = arith.addf %55, %60 : vector<8x128xf32>
    %62 = vector.extract_strided_slice %29 {offsets = [0, 5], sizes = [8, 1], strides = [1, 1]} : vector<8x128xf32> to vector<8x1xf32>
    %c189 = arith.constant 189 : index
    %c0_21 = arith.constant 0 : index
    %63 = vector.load %arg2[%c189, %c0_21] : memref<208x128xf32, #tpu.memory_space<vmem>>, vector<1x128xf32>
    %64 = vector.broadcast %62 : vector<8x1xf32> to vector<8x128xf32>
    %65 = vector.broadcast %63 : vector<1x128xf32> to vector<8x128xf32>
    %66 = arith.mulf %64, %65 : vector<8x128xf32>
    %67 = arith.addf %61, %66 : vector<8x128xf32>
    %cst_22 = arith.constant 0.000000e+00 : f32
    %68 = vector.broadcast %cst_22 : f32 to vector<8x128xf32>
    %69 = arith.maximumf %67, %68 : vector<8x128xf32>
    %c120_i32 = arith.constant 120 : i32
    %70 = tpu.dynamic_rotate %69 by %c120_i32 dim 1 : vector<8x128xf32>, i32 -> vector<8x128xf32>
    %71 = arith.addf %69, %70 : vector<8x128xf32>
    %c112_i32 = arith.constant 112 : i32
    %72 = tpu.dynamic_rotate %69 by %c112_i32 dim 1 : vector<8x128xf32>, i32 -> vector<8x128xf32>
    %73 = arith.addf %71, %72 : vector<8x128xf32>
    %c178 = arith.constant 178 : index
    %c0_23 = arith.constant 0 : index
    %74 = vector.load %arg2[%c178, %c0_23] : memref<208x128xf32, #tpu.memory_space<vmem>>, vector<1x128xf32>
    %75 = vector.extract_strided_slice %73 {offsets = [0, 0], sizes = [8, 1], strides = [1, 1]} : vector<8x128xf32> to vector<8x1xf32>
    %c192 = arith.constant 192 : index
    %c0_24 = arith.constant 0 : index
    %76 = vector.load %arg2[%c192, %c0_24] : memref<208x128xf32, #tpu.memory_space<vmem>>, vector<1x128xf32>
    %77 = vector.broadcast %75 : vector<8x1xf32> to vector<8x128xf32>
    %78 = vector.broadcast %76 : vector<1x128xf32> to vector<8x128xf32>
    %79 = arith.mulf %77, %78 : vector<8x128xf32>
    %80 = vector.broadcast %74 : vector<1x128xf32> to vector<8x128xf32>
    %81 = arith.addf %80, %79 : vector<8x128xf32>
    %82 = vector.extract_strided_slice %73 {offsets = [0, 1], sizes = [8, 1], strides = [1, 1]} : vector<8x128xf32> to vector<8x1xf32>
    %c193 = arith.constant 193 : index
    %c0_25 = arith.constant 0 : index
    %83 = vector.load %arg2[%c193, %c0_25] : memref<208x128xf32, #tpu.memory_space<vmem>>, vector<1x128xf32>
    %84 = vector.broadcast %82 : vector<8x1xf32> to vector<8x128xf32>
    %85 = vector.broadcast %83 : vector<1x128xf32> to vector<8x128xf32>
    %86 = arith.mulf %84, %85 : vector<8x128xf32>
    %87 = arith.addf %81, %86 : vector<8x128xf32>
    %88 = vector.extract_strided_slice %73 {offsets = [0, 2], sizes = [8, 1], strides = [1, 1]} : vector<8x128xf32> to vector<8x1xf32>
    %c194 = arith.constant 194 : index
    %c0_26 = arith.constant 0 : index
    %89 = vector.load %arg2[%c194, %c0_26] : memref<208x128xf32, #tpu.memory_space<vmem>>, vector<1x128xf32>
    %90 = vector.broadcast %88 : vector<8x1xf32> to vector<8x128xf32>
    %91 = vector.broadcast %89 : vector<1x128xf32> to vector<8x128xf32>
    %92 = arith.mulf %90, %91 : vector<8x128xf32>
    %93 = arith.addf %87, %92 : vector<8x128xf32>
    %94 = vector.extract_strided_slice %73 {offsets = [0, 3], sizes = [8, 1], strides = [1, 1]} : vector<8x128xf32> to vector<8x1xf32>
    %c195 = arith.constant 195 : index
    %c0_27 = arith.constant 0 : index
    %95 = vector.load %arg2[%c195, %c0_27] : memref<208x128xf32, #tpu.memory_space<vmem>>, vector<1x128xf32>
    %96 = vector.broadcast %94 : vector<8x1xf32> to vector<8x128xf32>
    %97 = vector.broadcast %95 : vector<1x128xf32> to vector<8x128xf32>
    %98 = arith.mulf %96, %97 : vector<8x128xf32>
    %99 = arith.addf %93, %98 : vector<8x128xf32>
    %100 = vector.extract_strided_slice %73 {offsets = [0, 4], sizes = [8, 1], strides = [1, 1]} : vector<8x128xf32> to vector<8x1xf32>
    %c196 = arith.constant 196 : index
    %c0_28 = arith.constant 0 : index
    %101 = vector.load %arg2[%c196, %c0_28] : memref<208x128xf32, #tpu.memory_space<vmem>>, vector<1x128xf32>
    %102 = vector.broadcast %100 : vector<8x1xf32> to vector<8x128xf32>
    %103 = vector.broadcast %101 : vector<1x128xf32> to vector<8x128xf32>
    %104 = arith.mulf %102, %103 : vector<8x128xf32>
    %105 = arith.addf %99, %104 : vector<8x128xf32>
    %106 = vector.extract_strided_slice %73 {offsets = [0, 5], sizes = [8, 1], strides = [1, 1]} : vector<8x128xf32> to vector<8x1xf32>
    %c197 = arith.constant 197 : index
    %c0_29 = arith.constant 0 : index
    %107 = vector.load %arg2[%c197, %c0_29] : memref<208x128xf32, #tpu.memory_space<vmem>>, vector<1x128xf32>
    %108 = vector.broadcast %106 : vector<8x1xf32> to vector<8x128xf32>
    %109 = vector.broadcast %107 : vector<1x128xf32> to vector<8x128xf32>
    %110 = arith.mulf %108, %109 : vector<8x128xf32>
    %111 = arith.addf %105, %110 : vector<8x128xf32>
    %112 = vector.extract_strided_slice %73 {offsets = [0, 6], sizes = [8, 1], strides = [1, 1]} : vector<8x128xf32> to vector<8x1xf32>
    %c198 = arith.constant 198 : index
    %c0_30 = arith.constant 0 : index
    %113 = vector.load %arg2[%c198, %c0_30] : memref<208x128xf32, #tpu.memory_space<vmem>>, vector<1x128xf32>
    %114 = vector.broadcast %112 : vector<8x1xf32> to vector<8x128xf32>
    %115 = vector.broadcast %113 : vector<1x128xf32> to vector<8x128xf32>
    %116 = arith.mulf %114, %115 : vector<8x128xf32>
    %117 = arith.addf %111, %116 : vector<8x128xf32>
    %118 = vector.extract_strided_slice %73 {offsets = [0, 7], sizes = [8, 1], strides = [1, 1]} : vector<8x128xf32> to vector<8x1xf32>
    %c199 = arith.constant 199 : index
    %c0_31 = arith.constant 0 : index
    %119 = vector.load %arg2[%c199, %c0_31] : memref<208x128xf32, #tpu.memory_space<vmem>>, vector<1x128xf32>
    %120 = vector.broadcast %118 : vector<8x1xf32> to vector<8x128xf32>
    %121 = vector.broadcast %119 : vector<1x128xf32> to vector<8x128xf32>
    %122 = arith.mulf %120, %121 : vector<8x128xf32>
    %123 = arith.addf %117, %122 : vector<8x128xf32>
    %cst_32 = arith.constant 0.000000e+00 : f32
    %124 = vector.broadcast %cst_32 : f32 to vector<8x128xf32>
    %125 = arith.maximumf %123, %124 : vector<8x128xf32>
    %c120_i32_33 = arith.constant 120 : i32
    %126 = tpu.dynamic_rotate %125 by %c120_i32_33 dim 1 : vector<8x128xf32>, i32 -> vector<8x128xf32>
    %127 = arith.addf %125, %126 : vector<8x128xf32>
    %c112_i32_34 = arith.constant 112 : i32
    %128 = tpu.dynamic_rotate %125 by %c112_i32_34 dim 1 : vector<8x128xf32>, i32 -> vector<8x128xf32>
    %129 = arith.addf %127, %128 : vector<8x128xf32>
    %c179 = arith.constant 179 : index
    %c0_35 = arith.constant 0 : index
    %130 = vector.load %arg2[%c179, %c0_35] : memref<208x128xf32, #tpu.memory_space<vmem>>, vector<1x128xf32>
    %131 = vector.extract_strided_slice %129 {offsets = [0, 0], sizes = [8, 1], strides = [1, 1]} : vector<8x128xf32> to vector<8x1xf32>
    %c200 = arith.constant 200 : index
    %c0_36 = arith.constant 0 : index
    %132 = vector.load %arg2[%c200, %c0_36] : memref<208x128xf32, #tpu.memory_space<vmem>>, vector<1x128xf32>
    %133 = vector.broadcast %131 : vector<8x1xf32> to vector<8x128xf32>
    %134 = vector.broadcast %132 : vector<1x128xf32> to vector<8x128xf32>
    %135 = arith.mulf %133, %134 : vector<8x128xf32>
    %136 = vector.broadcast %130 : vector<1x128xf32> to vector<8x128xf32>
    %137 = arith.addf %136, %135 : vector<8x128xf32>
    %138 = vector.extract_strided_slice %129 {offsets = [0, 1], sizes = [8, 1], strides = [1, 1]} : vector<8x128xf32> to vector<8x1xf32>
    %c201 = arith.constant 201 : index
    %c0_37 = arith.constant 0 : index
    %139 = vector.load %arg2[%c201, %c0_37] : memref<208x128xf32, #tpu.memory_space<vmem>>, vector<1x128xf32>
    %140 = vector.broadcast %138 : vector<8x1xf32> to vector<8x128xf32>
    %141 = vector.broadcast %139 : vector<1x128xf32> to vector<8x128xf32>
    %142 = arith.mulf %140, %141 : vector<8x128xf32>
    %143 = arith.addf %137, %142 : vector<8x128xf32>
    %144 = vector.extract_strided_slice %129 {offsets = [0, 2], sizes = [8, 1], strides = [1, 1]} : vector<8x128xf32> to vector<8x1xf32>
    %c202 = arith.constant 202 : index
    %c0_38 = arith.constant 0 : index
    %145 = vector.load %arg2[%c202, %c0_38] : memref<208x128xf32, #tpu.memory_space<vmem>>, vector<1x128xf32>
    %146 = vector.broadcast %144 : vector<8x1xf32> to vector<8x128xf32>
    %147 = vector.broadcast %145 : vector<1x128xf32> to vector<8x128xf32>
    %148 = arith.mulf %146, %147 : vector<8x128xf32>
    %149 = arith.addf %143, %148 : vector<8x128xf32>
    %150 = vector.extract_strided_slice %129 {offsets = [0, 3], sizes = [8, 1], strides = [1, 1]} : vector<8x128xf32> to vector<8x1xf32>
    %c203 = arith.constant 203 : index
    %c0_39 = arith.constant 0 : index
    %151 = vector.load %arg2[%c203, %c0_39] : memref<208x128xf32, #tpu.memory_space<vmem>>, vector<1x128xf32>
    %152 = vector.broadcast %150 : vector<8x1xf32> to vector<8x128xf32>
    %153 = vector.broadcast %151 : vector<1x128xf32> to vector<8x128xf32>
    %154 = arith.mulf %152, %153 : vector<8x128xf32>
    %155 = arith.addf %149, %154 : vector<8x128xf32>
    %156 = vector.extract_strided_slice %129 {offsets = [0, 4], sizes = [8, 1], strides = [1, 1]} : vector<8x128xf32> to vector<8x1xf32>
    %c204 = arith.constant 204 : index
    %c0_40 = arith.constant 0 : index
    %157 = vector.load %arg2[%c204, %c0_40] : memref<208x128xf32, #tpu.memory_space<vmem>>, vector<1x128xf32>
    %158 = vector.broadcast %156 : vector<8x1xf32> to vector<8x128xf32>
    %159 = vector.broadcast %157 : vector<1x128xf32> to vector<8x128xf32>
    %160 = arith.mulf %158, %159 : vector<8x128xf32>
    %161 = arith.addf %155, %160 : vector<8x128xf32>
    %162 = vector.extract_strided_slice %129 {offsets = [0, 5], sizes = [8, 1], strides = [1, 1]} : vector<8x128xf32> to vector<8x1xf32>
    %c205 = arith.constant 205 : index
    %c0_41 = arith.constant 0 : index
    %163 = vector.load %arg2[%c205, %c0_41] : memref<208x128xf32, #tpu.memory_space<vmem>>, vector<1x128xf32>
    %164 = vector.broadcast %162 : vector<8x1xf32> to vector<8x128xf32>
    %165 = vector.broadcast %163 : vector<1x128xf32> to vector<8x128xf32>
    %166 = arith.mulf %164, %165 : vector<8x128xf32>
    %167 = arith.addf %161, %166 : vector<8x128xf32>
    %168 = vector.extract_strided_slice %129 {offsets = [0, 6], sizes = [8, 1], strides = [1, 1]} : vector<8x128xf32> to vector<8x1xf32>
    %c206 = arith.constant 206 : index
    %c0_42 = arith.constant 0 : index
    %169 = vector.load %arg2[%c206, %c0_42] : memref<208x128xf32, #tpu.memory_space<vmem>>, vector<1x128xf32>
    %170 = vector.broadcast %168 : vector<8x1xf32> to vector<8x128xf32>
    %171 = vector.broadcast %169 : vector<1x128xf32> to vector<8x128xf32>
    %172 = arith.mulf %170, %171 : vector<8x128xf32>
    %173 = arith.addf %167, %172 : vector<8x128xf32>
    %174 = vector.extract_strided_slice %129 {offsets = [0, 7], sizes = [8, 1], strides = [1, 1]} : vector<8x128xf32> to vector<8x1xf32>
    %c207 = arith.constant 207 : index
    %c0_43 = arith.constant 0 : index
    %175 = vector.load %arg2[%c207, %c0_43] : memref<208x128xf32, #tpu.memory_space<vmem>>, vector<1x128xf32>
    %176 = vector.broadcast %174 : vector<8x1xf32> to vector<8x128xf32>
    %177 = vector.broadcast %175 : vector<1x128xf32> to vector<8x128xf32>
    %178 = arith.mulf %176, %177 : vector<8x128xf32>
    %179 = arith.addf %173, %178 : vector<8x128xf32>
    %c0_44 = arith.constant 0 : index
    %c0_45 = arith.constant 0 : index
    %180 = vector.load %arg3[%c0_44, %c0_45] : memref<8x128xf32, #tpu.memory_space<vmem>>, vector<8x128xf32>
    tpu.vector_store %arg3[%c0_44, %c0_45], %179 {strides = array<i32>} : memref<8x128xf32, #tpu.memory_space<vmem>>, vector<8x128xf32>,
    return
  }
  func.func @transform_0(%arg0: i32) -> (i32, i32) {
    %c0_i32 = arith.constant 0 : i32
    %c0_i32_0 = arith.constant 0 : i32
    return %arg0, %c0_i32 : i32, i32
  }
  func.func @transform_1(%arg0: i32) -> (i32, i32) {
    %c0_i32 = arith.constant 0 : i32
    %c0_i32_0 = arith.constant 0 : i32
    %c0_i32_1 = arith.constant 0 : i32
    return %c0_i32, %c0_i32_0 : i32, i32
  }
  func.func @transform_2(%arg0: i32) -> (i32, i32) {
    %c0_i32 = arith.constant 0 : i32
    %c0_i32_0 = arith.constant 0 : i32
    return %arg0, %c0_i32 : i32, i32
  }
}

</mosaic_0001>

<llo_original>
// kernel: tpu_custom_call.1
$region0: #{tpu_custom_call.1}
  #allocation0 [shape = 'u32[]', space=smem, size = 0x4, offset = 0x4, fixed_abs, tag = 'smem constant byte address 0x4 - core index']
  #allocation1 [shape = 'u32[144,128]{1,0:T(1,128)}', space=vmem, size = 0x12000, scoped, tag = 'internal scratch']
  %s0 = inlined_call_operand.vmem [shape: f32[128,32], index: 0, kind: input, shape index: {}]
  %s1 = inlined_call_operand.hbm [shape: f32[208,128], index: 1, kind: input, shape index: {}]
  %s2 = inlined_call_operand.hbm [shape: f32[8,128], index: 2, kind: output, shape index: {}]
  %s3 = sld [smem:[#allocation0]]
  $region22: #{tpu_custom_call.1} parent=0
    _
  %s5 = ssub.s32 1, %s3
  %s6 = scalar_select 0, %s5, %s3
  $region1: #{tpu_custom_call.1} parent=0
    #allocation2 [shape = 'u8[106496]{0}', space=vmem, size = 0x1a000, scoped, tag = 'input window, operand 1, single buffered']
    #allocation3 [shape = 's32[1]{0}', space=sflag, size = 0x4, scoped, tag = 'scoped memory for tpu_custom_call.1']
    #allocation4 [shape = 's32[1]{0}', space=sflag, size = 0x4, scoped, tag = 'scoped memory for tpu_custom_call.1']
    #allocation5 [shape = 'u8[4096]{0}', space=vmem, size = 0x1000, scoped, tag = 'output window, operand 0, single buffered']
    %7 = vsyncpa [#allocation3], 0
    %8 = vsyncpa [#allocation4], 0
    // Predicated region
    $region2: #{tpu_custom_call.1} parent=1 // pred_check
      _
    $region3: #{tpu_custom_call.1} parent=1 // pred_check_branch
      %10 = sbr.rel (0) target = $region5
    $region4: #{tpu_custom_call.1} parent=1 // pred_region
      _
    $region5: #{tpu_custom_call.1} parent=1 // pred_fallthru
      _
    // Predicated region
    $region6: #{tpu_custom_call.1} parent=1 // pred_check
      _
    $region7: #{tpu_custom_call.1} parent=1 // pred_check_branch
      %12 = sbr.rel (0) target = $region9
    $region8: #{tpu_custom_call.1} parent=1 // pred_region
      %s14 = ssub.s32 3328, 3328
      %15 = vsyncadd [#allocation3], %s14
      %s16 = sshll.u32 [#allocation2], 4
      %s17 = int_to_ptr.vmem [resolvable:$true] %s16
      %22 = dma.hbm_to_vmem [thread:$0]  %s1, 3328, %s17, [#allocation3], 128, 128, 8
    $region9: #{tpu_custom_call.1} parent=1 // pred_fallthru
      _
    // Predicated region
    $region10: #{tpu_custom_call.1} parent=1 // pred_check
      _
    $region11: #{tpu_custom_call.1} parent=1 // pred_check_branch
      %24 = sbr.rel (0) target = $region13
    $region12: #{tpu_custom_call.1} parent=1 // pred_region
      %25 = dma.done [#allocation3], 3328
    $region13: #{tpu_custom_call.1} parent=1 // pred_fallthru
      _
    %v26 = vld [vmem:[%s0] sm:$0xff]
    %v27 = vld [vmem:[%s0 + $0x8] sm:$0xff]
    %v28 = vld [vmem:[%s0 + $0x10] sm:$0xff]
    %v29 = vld [vmem:[%s0 + $0x18] sm:$0xff]
    %v30 = vld [vmem:[%s0 + $0x20] sm:$0xff]
    %v31 = vld [vmem:[%s0 + $0x28] sm:$0xff]
    %v32 = vld [vmem:[%s0 + $0x30] sm:$0xff]
    %v33 = vld [vmem:[%s0 + $0x38] sm:$0xff]
    %v34 = vld [vmem:[%s0 + $0x40] sm:$0xff]
    %v35 = vld [vmem:[%s0 + $0x48] sm:$0xff]
    %v36 = vld [vmem:[%s0 + $0x50] sm:$0xff]
    %v37 = vld [vmem:[%s0 + $0x58] sm:$0xff]
    %v38 = vld [vmem:[%s0 + $0x60] sm:$0xff]
    %v39 = vld [vmem:[%s0 + $0x68] sm:$0xff]
    %v40 = vld [vmem:[%s0 + $0x70] sm:$0xff]
    %v41 = vld [vmem:[%s0 + $0x78] sm:$0xff]
    %v42 = vld [vmem:[#allocation2] sm:$0xff]
    %v43 = vld [vmem:[#allocation2 + $0x8] sm:$0xff]
    %v44 = vld [vmem:[#allocation2 + $0x10] sm:$0xff]
    %v45 = vld [vmem:[#allocation2 + $0x18] sm:$0xff]
    %v46 = vrot.slane %v26, 1
    %v47 = vrot.slane %v27, 1
    %v48 = vrot.slane %v28, 1
    %v49 = vrot.slane %v29, 1
    %v50 = vrot.slane %v30, 1
    %v51 = vrot.slane %v31, 1
    %v52 = vrot.slane %v32, 1
    %v53 = vrot.slane %v33, 1
    %v54 = vrot.slane %v34, 1
    %v55 = vrot.slane %v35, 1
    %v56 = vrot.slane %v36, 1
    %v57 = vrot.slane %v37, 1
    %v58 = vrot.slane %v38, 1
    %v59 = vrot.slane %v39, 1
    %v60 = vrot.slane %v40, 1
    %v61 = vrot.slane %v41, 1
    %v62 = vlaneseq
    %v63 = vshrl.u32 %v62, 7
    %vm64 = vcmp.lt.s32.totalorder %v63, 7
    %v65 = vsel %vm64, %v60, %v61
    %v66 = vsel %vm64, %v59, %v60
    %v67 = vsel %vm64, %v58, %v59
    %v68 = vsel %vm64, %v57, %v58
    %v69 = vsel %vm64, %v56, %v57
    %v70 = vsel %vm64, %v55, %v56
    %v71 = vsel %vm64, %v54, %v55
    %v72 = vsel %vm64, %v53, %v54
    %v73 = vsel %vm64, %v52, %v53
    %v74 = vsel %vm64, %v51, %v52
    %v75 = vsel %vm64, %v50, %v51
    %v76 = vsel %vm64, %v49, %v50
    %v77 = vsel %vm64, %v48, %v49
    %v78 = vsel %vm64, %v47, %v48
    %v79 = vsel %vm64, %v46, %v47
    %v80 = vsel %vm64, %v61, %v46
    %v81 = vld [vmem:[#allocation2 + $0x20] sm:$0xff]
    %v82 = vld [vmem:[#allocation2 + $0x28] sm:$0xff]
    %v83 = vld [vmem:[#allocation2 + $0x30] sm:$0xff]
    %v84 = vld [vmem:[#allocation2 + $0x38] sm:$0xff]
    %vm85 = vcmask 261120
    %v87 = vsel %vm85, %v79, 0
    %v90 = vsel %vm85, %v78, 0
    %v93 = vsel %vm85, %v77, 0
    %v96 = vsel %vm85, %v76, 0
    %v99 = vsel %vm85, %v75, 0
    %v102 = vsel %vm85, %v74, 0
    %v105 = vsel %vm85, %v73, 0
    %v108 = vsel %vm85, %v72, 0
    %v111 = vsel %vm85, %v71, 0
    %v114 = vsel %vm85, %v70, 0
    %v117 = vsel %vm85, %v69, 0
    %v120 = vsel %vm85, %v68, 0
    %v123 = vsel %vm85, %v67, 0
    %v126 = vsel %vm85, %v66, 0
    %v129 = vsel %vm85, %v65, 0
    %v132 = vsel %vm85, %v80, 0
    %134 = vmatprep.subr.mxu0 0.0
    %135 = vmatpush1.msra.mxu0 0.0
    %136 = vmatprep.subr.mxu0 0.0
    %137 = vmatpush1.msra.mxu0 0.0
    %138 = vmatprep.subr.mxu0 0.0
    %139 = vmatpush1.msra.mxu0 0.0
    %140 = vmatprep.subr.mxu0 0.0
    %141 = vmatpush1.msra.mxu0 0.0
    %142 = vmatprep.subr.mxu0 0.0
    %143 = vmatpush1.msra.mxu0 0.0
    %144 = vmatprep.subr.mxu0 0.0
    %145 = vmatpush1.msra.mxu0 0.0
    %146 = vmatprep.subr.mxu0 0.0
    %147 = vmatpush1.msra.mxu0 0.0
    %148 = vmatprep.subr.mxu0 0.0
    %149 = vmatpush1.msra.mxu0 0.0
    %150 = vmatprep.subr.mxu0 0.0
    %151 = vmatpush1.msra.mxu0 0.0
    %152 = vmatprep.subr.mxu0 0.0
    %153 = vmatpush1.msra.mxu0 0.0
    %154 = vmatprep.subr.mxu0 0.0
    %155 = vmatpush1.msra.mxu0 0.0
    %156 = vmatprep.subr.mxu0 0.0
    %157 = vmatpush1.msra.mxu0 0.0
    %158 = vmatprep.subr.mxu0 0.0
    %159 = vmatpush1.msra.mxu0 %v84
    %160 = vmatprep.subr.mxu0 0.0
    %161 = vmatpush1.msra.mxu0 %v83
    %162 = vmatprep.subr.mxu0 0.0
    %163 = vmatpush1.msra.mxu0 %v82
    %164 = vmatprep.subr.mxu0 0.0
    %165 = vmatpush1.msra.mxu0 %v81
    %166 = vmatprep.subr.mxu0 0.0
    %167 = vmatpush2.msra.mxu0 0.0
    %168 = vmatprep.subr.mxu0 0.0
    %169 = vmatpush2.msra.mxu0 0.0
    %170 = vmatprep.subr.mxu0 0.0
    %171 = vmatpush2.msra.mxu0 0.0
    %172 = vmatprep.subr.mxu0 0.0
    %173 = vmatpush2.msra.mxu0 0.0
    %174 = vmatprep.subr.mxu0 0.0
    %175 = vmatpush2.msra.mxu0 0.0
    %176 = vmatprep.subr.mxu0 0.0
    %177 = vmatpush2.msra.mxu0 0.0
    %178 = vmatprep.subr.mxu0 0.0
    %179 = vmatpush2.msra.mxu0 0.0
    %180 = vmatprep.subr.mxu0 0.0
    %181 = vmatpush2.msra.mxu0 0.0
    %182 = vmatprep.subr.mxu0 0.0
    %183 = vmatpush2.msra.mxu0 0.0
    %184 = vmatprep.subr.mxu0 0.0
    %185 = vmatpush2.msra.mxu0 0.0
    %186 = vmatprep.subr.mxu0 0.0
    %187 = vmatpush2.msra.mxu0 0.0
    %188 = vmatprep.subr.mxu0 0.0
    %189 = vmatpush2.msra.mxu0 0.0
    %190 = vmatprep.subr.mxu0 0.0
    %191 = vmatpush2.msra.mxu0 0.0
    %192 = vmatprep.subr.mxu0 0.0
    %193 = vmatpush2.msra.mxu0 0.0
    %194 = vmatprep.subr.mxu0 0.0
    %195 = vmatpush2.msra.mxu0 0.0
    %196 = vmatprep.subr.mxu0 0.0
    %197 = vmatpush2.msra.mxu0 0.0
    %198 = vmatprep.mubr.f32.mxu0 0.0
    %199 = vmatmul.mubr.f32.gmra.mxu0 %v87
    %v200 = vpop.f32.mrf.mxu0
    %v201 = vadd.f32 0.0, %v200
    %v202 = vpop.f32.mrf.mxu0
    %203 = vmatprep.mubr.f32.mxu0 0.0
    %204 = vmatmul.mubr.f32.gmra.mxu0 %v90
    %v205 = vpop.f32.mrf.mxu0
    %v206 = vadd.f32 0.0, %v205
    %v207 = vpop.f32.mrf.mxu0
    %208 = vmatprep.mubr.f32.mxu0 0.0
    %209 = vmatmul.mubr.f32.gmra.mxu0 %v93
    %v210 = vpop.f32.mrf.mxu0
    %v211 = vadd.f32 0.0, %v210
    %v212 = vpop.f32.mrf.mxu0
    %213 = vmatprep.mubr.f32.mxu0 0.0
    %214 = vmatmul.mubr.f32.gmra.mxu0 %v96
    %v215 = vpop.f32.mrf.mxu0
    %v216 = vadd.f32 0.0, %v215
    %v217 = vpop.f32.mrf.mxu0
    %218 = vmatprep.mubr.f32.mxu0 0.0
    %219 = vmatmul.mubr.f32.gmra.mxu0 %v99
    %v220 = vpop.f32.mrf.mxu0
    %v221 = vadd.f32 0.0, %v220
    %v222 = vpop.f32.mrf.mxu0
    %223 = vmatprep.mubr.f32.mxu0 0.0
    %224 = vmatmul.mubr.f32.gmra.mxu0 %v102
    %v225 = vpop.f32.mrf.mxu0
    %v226 = vadd.f32 0.0, %v225
    %v227 = vpop.f32.mrf.mxu0
    %228 = vmatprep.mubr.f32.mxu0 0.0
    %229 = vmatmul.mubr.f32.gmra.mxu0 %v105
    %v230 = vpop.f32.mrf.mxu0
    %v231 = vadd.f32 0.0, %v230
    %v232 = vpop.f32.mrf.mxu0
    %233 = vmatprep.mubr.f32.mxu0 0.0
    %234 = vmatmul.mubr.f32.gmra.mxu0 %v108
    %v235 = vpop.f32.mrf.mxu0
    %v236 = vadd.f32 0.0, %v235
    %v237 = vpop.f32.mrf.mxu0
    %238 = vmatprep.mubr.f32.mxu0 0.0
    %239 = vmatmul.mubr.f32.gmra.mxu0 %v111
    %v240 = vpop.f32.mrf.mxu0
    %v241 = vadd.f32 0.0, %v240
    %v242 = vpop.f32.mrf.mxu0
    %243 = vmatprep.mubr.f32.mxu0 0.0
    %244 = vmatmul.mubr.f32.gmra.mxu0 %v114
    %v245 = vpop.f32.mrf.mxu0
    %v246 = vadd.f32 0.0, %v245
    %v247 = vpop.f32.mrf.mxu0
    %248 = vmatprep.mubr.f32.mxu0 0.0
    %249 = vmatmul.mubr.f32.gmra.mxu0 %v117
    %v250 = vpop.f32.mrf.mxu0
    %v251 = vadd.f32 0.0, %v250
    %v252 = vpop.f32.mrf.mxu0
    %253 = vmatprep.mubr.f32.mxu0 0.0
    %254 = vmatmul.mubr.f32.gmra.mxu0 %v120
    %v255 = vpop.f32.mrf.mxu0
    %v256 = vadd.f32 0.0, %v255
    %v257 = vpop.f32.mrf.mxu0
    %258 = vmatprep.mubr.f32.mxu0 0.0
    %259 = vmatmul.mubr.f32.gmra.mxu0 %v123
    %v260 = vpop.f32.mrf.mxu0
    %v261 = vadd.f32 0.0, %v260
    %v262 = vpop.f32.mrf.mxu0
    %263 = vmatprep.mubr.f32.mxu0 0.0
    %264 = vmatmul.mubr.f32.gmra.mxu0 %v126
    %v265 = vpop.f32.mrf.mxu0
    %v266 = vadd.f32 0.0, %v265
    %v267 = vpop.f32.mrf.mxu0
    %268 = vmatprep.mubr.f32.mxu0 0.0
    %269 = vmatmul.mubr.f32.gmra.mxu0 %v129
    %v270 = vpop.f32.mrf.mxu0
    %v271 = vadd.f32 0.0, %v270
    %v272 = vpop.f32.mrf.mxu0
    %273 = vmatprep.mubr.f32.mxu0 0.0
    %274 = vmatmul.mubr.f32.gmra.mxu0 %v132
    %v275 = vpop.f32.mrf.mxu0
    %v276 = vadd.f32 0.0, %v275
    %v277 = vpop.f32.mrf.mxu0
    %278 = vdwg.mxu0
    %v280 = vsel %vm85, %v26, 0
    %v283 = vsel %vm85, %v27, 0
    %v286 = vsel %vm85, %v28, 0
    %v289 = vsel %vm85, %v29, 0
    %v292 = vsel %vm85, %v30, 0
    %v295 = vsel %vm85, %v31, 0
    %v298 = vsel %vm85, %v32, 0
    %v301 = vsel %vm85, %v33, 0
    %v304 = vsel %vm85, %v34, 0
    %v307 = vsel %vm85, %v35, 0
    %v310 = vsel %vm85, %v36, 0
    %v313 = vsel %vm85, %v37, 0
    %v316 = vsel %vm85, %v38, 0
    %v319 = vsel %vm85, %v39, 0
    %v322 = vsel %vm85, %v40, 0
    %v325 = vsel %vm85, %v41, 0
    %327 = vmatprep.subr.mxu0 0.0
    %328 = vmatpush1.msra.mxu0 0.0
    %329 = vmatprep.subr.mxu0 0.0
    %330 = vmatpush1.msra.mxu0 0.0
    %331 = vmatprep.subr.mxu0 0.0
    %332 = vmatpush1.msra.mxu0 0.0
    %333 = vmatprep.subr.mxu0 0.0
    %334 = vmatpush1.msra.mxu0 0.0
    %335 = vmatprep.subr.mxu0 0.0
    %336 = vmatpush1.msra.mxu0 0.0
    %337 = vmatprep.subr.mxu0 0.0
    %338 = vmatpush1.msra.mxu0 0.0
    %339 = vmatprep.subr.mxu0 0.0
    %340 = vmatpush1.msra.mxu0 0.0
    %341 = vmatprep.subr.mxu0 0.0
    %342 = vmatpush1.msra.mxu0 0.0
    %343 = vmatprep.subr.mxu0 0.0
    %344 = vmatpush1.msra.mxu0 0.0
    %345 = vmatprep.subr.mxu0 0.0
    %346 = vmatpush1.msra.mxu0 0.0
    %347 = vmatprep.subr.mxu0 0.0
    %348 = vmatpush1.msra.mxu0 0.0
    %349 = vmatprep.subr.mxu0 0.0
    %350 = vmatpush1.msra.mxu0 0.0
    %351 = vmatprep.subr.mxu0 0.0
    %352 = vmatpush1.msra.mxu0 %v45
    %353 = vmatprep.subr.mxu0 0.0
    %354 = vmatpush1.msra.mxu0 %v44
    %355 = vmatprep.subr.mxu0 0.0
    %356 = vmatpush1.msra.mxu0 %v43
    %357 = vmatprep.subr.mxu0 0.0
    %358 = vmatpush1.msra.mxu0 %v42
    %359 = vmatprep.subr.mxu0 0.0
    %360 = vmatpush2.msra.mxu0 0.0
    %361 = vmatprep.subr.mxu0 0.0
    %362 = vmatpush2.msra.mxu0 0.0
    %363 = vmatprep.subr.mxu0 0.0
    %364 = vmatpush2.msra.mxu0 0.0
    %365 = vmatprep.subr.mxu0 0.0
    %366 = vmatpush2.msra.mxu0 0.0
    %367 = vmatprep.subr.mxu0 0.0
    %368 = vmatpush2.msra.mxu0 0.0
    %369 = vmatprep.subr.mxu0 0.0
    %370 = vmatpush2.msra.mxu0 0.0
    %371 = vmatprep.subr.mxu0 0.0
    %372 = vmatpush2.msra.mxu0 0.0
    %373 = vmatprep.subr.mxu0 0.0
    %374 = vmatpush2.msra.mxu0 0.0
    %375 = vmatprep.subr.mxu0 0.0
    %376 = vmatpush2.msra.mxu0 0.0
    %377 = vmatprep.subr.mxu0 0.0
    %378 = vmatpush2.msra.mxu0 0.0
    %379 = vmatprep.subr.mxu0 0.0
    %380 = vmatpush2.msra.mxu0 0.0
    %381 = vmatprep.subr.mxu0 0.0
    %382 = vmatpush2.msra.mxu0 0.0
    %383 = vmatprep.subr.mxu0 0.0
    %384 = vmatpush2.msra.mxu0 0.0
    %385 = vmatprep.subr.mxu0 0.0
    %386 = vmatpush2.msra.mxu0 0.0
    %387 = vmatprep.subr.mxu0 0.0
    %388 = vmatpush2.msra.mxu0 0.0
    %389 = vmatprep.subr.mxu0 0.0
    %390 = vmatpush2.msra.mxu0 0.0
    %391 = vmatprep.mubr.f32.mxu0 0.0
    %392 = vmatmul.mubr.f32.gmra.mxu0 %v280
    %v393 = vpop.f32.mrf.mxu0
    %v394 = vadd.f32 %v201, %v393
    %v395 = vpop.f32.mrf.mxu0
    %396 = vmatprep.mubr.f32.mxu0 0.0
    %397 = vmatmul.mubr.f32.gmra.mxu0 %v283
    %v398 = vpop.f32.mrf.mxu0
    %v399 = vadd.f32 %v206, %v398
    %v400 = vpop.f32.mrf.mxu0
    %401 = vmatprep.mubr.f32.mxu0 0.0
    %402 = vmatmul.mubr.f32.gmra.mxu0 %v286
    %v403 = vpop.f32.mrf.mxu0
    %v404 = vadd.f32 %v211, %v403
    %v405 = vpop.f32.mrf.mxu0
    %406 = vmatprep.mubr.f32.mxu0 0.0
    %407 = vmatmul.mubr.f32.gmra.mxu0 %v289
    %v408 = vpop.f32.mrf.mxu0
    %v409 = vadd.f32 %v216, %v408
    %v410 = vpop.f32.mrf.mxu0
    %411 = vmatprep.mubr.f32.mxu0 0.0
    %412 = vmatmul.mubr.f32.gmra.mxu0 %v292
    %v413 = vpop.f32.mrf.mxu0
    %v414 = vadd.f32 %v221, %v413
    %v415 = vpop.f32.mrf.mxu0
    %416 = vmatprep.mubr.f32.mxu0 0.0
    %417 = vmatmul.mubr.f32.gmra.mxu0 %v295
    %v418 = vpop.f32.mrf.mxu0
    %v419 = vadd.f32 %v226, %v418
    %v420 = vpop.f32.mrf.mxu0
    %421 = vmatprep.mubr.f32.mxu0 0.0
    %422 = vmatmul.mubr.f32.gmra.mxu0 %v298
    %v423 = vpop.f32.mrf.mxu0
    %v424 = vadd.f32 %v231, %v423
    %v425 = vpop.f32.mrf.mxu0
    %426 = vmatprep.mubr.f32.mxu0 0.0
    %427 = vmatmul.mubr.f32.gmra.mxu0 %v301
    %v428 = vpop.f32.mrf.mxu0
    %v429 = vadd.f32 %v236, %v428
    %v430 = vpop.f32.mrf.mxu0
    %431 = vmatprep.mubr.f32.mxu0 0.0
    %432 = vmatmul.mubr.f32.gmra.mxu0 %v304
    %v433 = vpop.f32.mrf.mxu0
    %v434 = vadd.f32 %v241, %v433
    %v435 = vpop.f32.mrf.mxu0
    %436 = vmatprep.mubr.f32.mxu0 0.0
    %437 = vmatmul.mubr.f32.gmra.mxu0 %v307
    %v438 = vpop.f32.mrf.mxu0
    %v439 = vadd.f32 %v246, %v438
    %v440 = vpop.f32.mrf.mxu0
    %441 = vmatprep.mubr.f32.mxu0 0.0
    %442 = vmatmul.mubr.f32.gmra.mxu0 %v310
    %v443 = vpop.f32.mrf.mxu0
    %v444 = vadd.f32 %v251, %v443
    %v445 = vpop.f32.mrf.mxu0
    %446 = vmatprep.mubr.f32.mxu0 0.0
    %447 = vmatmul.mubr.f32.gmra.mxu0 %v313
    %v448 = vpop.f32.mrf.mxu0
    %v449 = vadd.f32 %v256, %v448
    %v450 = vpop.f32.mrf.mxu0
    %451 = vmatprep.mubr.f32.mxu0 0.0
    %452 = vmatmul.mubr.f32.gmra.mxu0 %v316
    %v453 = vpop.f32.mrf.mxu0
    %v454 = vadd.f32 %v261, %v453
    %v455 = vpop.f32.mrf.mxu0
    %456 = vmatprep.mubr.f32.mxu0 0.0
    %457 = vmatmul.mubr.f32.gmra.mxu0 %v319
    %v458 = vpop.f32.mrf.mxu0
    %v459 = vadd.f32 %v266, %v458
    %v460 = vpop.f32.mrf.mxu0
    %461 = vmatprep.mubr.f32.mxu0 0.0
    %462 = vmatmul.mubr.f32.gmra.mxu0 %v322
    %v463 = vpop.f32.mrf.mxu0
    %v464 = vadd.f32 %v271, %v463
    %v465 = vpop.f32.mrf.mxu0
    %466 = vmatprep.mubr.f32.mxu0 0.0
    %467 = vmatmul.mubr.f32.gmra.mxu0 %v325
    %v468 = vpop.f32.mrf.mxu0
    %v469 = vadd.f32 %v276, %v468
    %v470 = vpop.f32.mrf.mxu0
    %471 = vdwg.mxu0
    %v472 = vrot.slane %v26, 2
    %v473 = vrot.slane %v27, 2
    %v474 = vrot.slane %v28, 2
    %v475 = vrot.slane %v29, 2
    %v476 = vrot.slane %v30, 2
    %v477 = vrot.slane %v31, 2
    %v478 = vrot.slane %v32, 2
    %v479 = vrot.slane %v33, 2
    %v480 = vrot.slane %v34, 2
    %v481 = vrot.slane %v35, 2
    %v482 = vrot.slane %v36, 2
    %v483 = vrot.slane %v37, 2
    %v484 = vrot.slane %v38, 2
    %v485 = vrot.slane %v39, 2
    %v486 = vrot.slane %v40, 2
    %v487 = vrot.slane %v41, 2
    %vm488 = vcmp.lt.s32.totalorder %v63, 6
    %v489 = vsel %vm488, %v486, %v487
    %v490 = vsel %vm488, %v485, %v486
    %v491 = vsel %vm488, %v484, %v485
    %v492 = vsel %vm488, %v483, %v484
    %v493 = vsel %vm488, %v482, %v483
    %v494 = vsel %vm488, %v481, %v482
    %v495 = vsel %vm488, %v480, %v481
    %v496 = vsel %vm488, %v479, %v480
    %v497 = vsel %vm488, %v478, %v479
    %v498 = vsel %vm488, %v477, %v478
    %v499 = vsel %vm488, %v476, %v477
    %v500 = vsel %vm488, %v475, %v476
    %v501 = vsel %vm488, %v474, %v475
    %v502 = vsel %vm488, %v473, %v474
    %v503 = vsel %vm488, %v472, %v473
    %v504 = vsel %vm488, %v487, %v472
    %v505 = vld [vmem:[#allocation2 + $0x40] sm:$0xff]
    %v506 = vld [vmem:[#allocation2 + $0x48] sm:$0xff]
    %v507 = vld [vmem:[#allocation2 + $0x50] sm:$0xff]
    %v508 = vld [vmem:[#allocation2 + $0x58] sm:$0xff]
    %v510 = vsel %vm85, %v503, 0
    %v513 = vsel %vm85, %v502, 0
    %v516 = vsel %vm85, %v501, 0
    %v519 = vsel %vm85, %v500, 0
    %v522 = vsel %vm85, %v499, 0
    %v525 = vsel %vm85, %v498, 0
    %v528 = vsel %vm85, %v497, 0
    %v531 = vsel %vm85, %v496, 0
    %v534 = vsel %vm85, %v495, 0
    %v537 = vsel %vm85, %v494, 0
    %v540 = vsel %vm85, %v493, 0
    %v543 = vsel %vm85, %v492, 0
    %v546 = vsel %vm85, %v491, 0
    %v549 = vsel %vm85, %v490, 0
    %v552 = vsel %vm85, %v489, 0
    %v555 = vsel %vm85, %v504, 0
    %557 = vmatprep.subr.mxu0 0.0
    %558 = vmatpush1.msra.mxu0 0.0
    %559 = vmatprep.subr.mxu0 0.0
    %560 = vmatpush1.msra.mxu0 0.0
    %561 = vmatprep.subr.mxu0 0.0
    %562 = vmatpush1.msra.mxu0 0.0
    %563 = vmatprep.subr.mxu0 0.0
    %564 = vmatpush1.msra.mxu0 0.0
    %565 = vmatprep.subr.mxu0 0.0
    %566 = vmatpush1.msra.mxu0 0.0
    %567 = vmatprep.subr.mxu0 0.0
    %568 = vmatpush1.msra.mxu0 0.0
    %569 = vmatprep.subr.mxu0 0.0
    %570 = vmatpush1.msra.mxu0 0.0
    %571 = vmatprep.subr.mxu0 0.0
    %572 = vmatpush1.msra.mxu0 0.0
    %573 = vmatprep.subr.mxu0 0.0
    %574 = vmatpush1.msra.mxu0 0.0
    %575 = vmatprep.subr.mxu0 0.0
    %576 = vmatpush1.msra.mxu0 0.0
    %577 = vmatprep.subr.mxu0 0.0
    %578 = vmatpush1.msra.mxu0 0.0
    %579 = vmatprep.subr.mxu0 0.0
    %580 = vmatpush1.msra.mxu0 0.0
    %581 = vmatprep.subr.mxu0 0.0
    %582 = vmatpush1.msra.mxu0 %v508
    %583 = vmatprep.subr.mxu0 0.0
    %584 = vmatpush1.msra.mxu0 %v507
    %585 = vmatprep.subr.mxu0 0.0
    %586 = vmatpush1.msra.mxu0 %v506
    %587 = vmatprep.subr.mxu0 0.0
    %588 = vmatpush1.msra.mxu0 %v505
    %589 = vmatprep.subr.mxu0 0.0
    %590 = vmatpush2.msra.mxu0 0.0
    %591 = vmatprep.subr.mxu0 0.0
    %592 = vmatpush2.msra.mxu0 0.0
    %593 = vmatprep.subr.mxu0 0.0
    %594 = vmatpush2.msra.mxu0 0.0
    %595 = vmatprep.subr.mxu0 0.0
    %596 = vmatpush2.msra.mxu0 0.0
    %597 = vmatprep.subr.mxu0 0.0
    %598 = vmatpush2.msra.mxu0 0.0
    %599 = vmatprep.subr.mxu0 0.0
    %600 = vmatpush2.msra.mxu0 0.0
    %601 = vmatprep.subr.mxu0 0.0
    %602 = vmatpush2.msra.mxu0 0.0
    %603 = vmatprep.subr.mxu0 0.0
    %604 = vmatpush2.msra.mxu0 0.0
    %605 = vmatprep.subr.mxu0 0.0
    %606 = vmatpush2.msra.mxu0 0.0
    %607 = vmatprep.subr.mxu0 0.0
    %608 = vmatpush2.msra.mxu0 0.0
    %609 = vmatprep.subr.mxu0 0.0
    %610 = vmatpush2.msra.mxu0 0.0
    %611 = vmatprep.subr.mxu0 0.0
    %612 = vmatpush2.msra.mxu0 0.0
    %613 = vmatprep.subr.mxu0 0.0
    %614 = vmatpush2.msra.mxu0 0.0
    %615 = vmatprep.subr.mxu0 0.0
    %616 = vmatpush2.msra.mxu0 0.0
    %617 = vmatprep.subr.mxu0 0.0
    %618 = vmatpush2.msra.mxu0 0.0
    %619 = vmatprep.subr.mxu0 0.0
    %620 = vmatpush2.msra.mxu0 0.0
    %621 = vmatprep.mubr.f32.mxu0 0.0
    %622 = vmatmul.mubr.f32.gmra.mxu0 %v510
    %v623 = vpop.f32.mrf.mxu0
    %v624 = vadd.f32 0.0, %v623
    %v625 = vpop.f32.mrf.mxu0
    %626 = vmatprep.mubr.f32.mxu0 0.0
    %627 = vmatmul.mubr.f32.gmra.mxu0 %v513
    %v628 = vpop.f32.mrf.mxu0
    %v629 = vadd.f32 0.0, %v628
    %v630 = vpop.f32.mrf.mxu0
    %631 = vmatprep.mubr.f32.mxu0 0.0
    %632 = vmatmul.mubr.f32.gmra.mxu0 %v516
    %v633 = vpop.f32.mrf.mxu0
    %v634 = vadd.f32 0.0, %v633
    %v635 = vpop.f32.mrf.mxu0
    %636 = vmatprep.mubr.f32.mxu0 0.0
    %637 = vmatmul.mubr.f32.gmra.mxu0 %v519
    %v638 = vpop.f32.mrf.mxu0
    %v639 = vadd.f32 0.0, %v638
    %v640 = vpop.f32.mrf.mxu0
    %641 = vmatprep.mubr.f32.mxu0 0.0
    %642 = vmatmul.mubr.f32.gmra.mxu0 %v522
    %v643 = vpop.f32.mrf.mxu0
    %v644 = vadd.f32 0.0, %v643
    %v645 = vpop.f32.mrf.mxu0
    %646 = vmatprep.mubr.f32.mxu0 0.0
    %647 = vmatmul.mubr.f32.gmra.mxu0 %v525
    %v648 = vpop.f32.mrf.mxu0
    %v649 = vadd.f32 0.0, %v648
    %v650 = vpop.f32.mrf.mxu0
    %651 = vmatprep.mubr.f32.mxu0 0.0
    %652 = vmatmul.mubr.f32.gmra.mxu0 %v528
    %v653 = vpop.f32.mrf.mxu0
    %v654 = vadd.f32 0.0, %v653
    %v655 = vpop.f32.mrf.mxu0
    %656 = vmatprep.mubr.f32.mxu0 0.0
    %657 = vmatmul.mubr.f32.gmra.mxu0 %v531
    %v658 = vpop.f32.mrf.mxu0
    %v659 = vadd.f32 0.0, %v658
    %v660 = vpop.f32.mrf.mxu0
    %661 = vmatprep.mubr.f32.mxu0 0.0
    %662 = vmatmul.mubr.f32.gmra.mxu0 %v534
    %v663 = vpop.f32.mrf.mxu0
    %v664 = vadd.f32 0.0, %v663
    %v665 = vpop.f32.mrf.mxu0
    %666 = vmatprep.mubr.f32.mxu0 0.0
    %667 = vmatmul.mubr.f32.gmra.mxu0 %v537
    %v668 = vpop.f32.mrf.mxu0
    %v669 = vadd.f32 0.0, %v668
    %v670 = vpop.f32.mrf.mxu0
    %671 = vmatprep.mubr.f32.mxu0 0.0
    %672 = vmatmul.mubr.f32.gmra.mxu0 %v540
    %v673 = vpop.f32.mrf.mxu0
    %v674 = vadd.f32 0.0, %v673
    %v675 = vpop.f32.mrf.mxu0
    %676 = vmatprep.mubr.f32.mxu0 0.0
    %677 = vmatmul.mubr.f32.gmra.mxu0 %v543
    %v678 = vpop.f32.mrf.mxu0
    %v679 = vadd.f32 0.0, %v678
    %v680 = vpop.f32.mrf.mxu0
    %681 = vmatprep.mubr.f32.mxu0 0.0
    %682 = vmatmul.mubr.f32.gmra.mxu0 %v546
    %v683 = vpop.f32.mrf.mxu0
    %v684 = vadd.f32 0.0, %v683
    %v685 = vpop.f32.mrf.mxu0
    %686 = vmatprep.mubr.f32.mxu0 0.0
    %687 = vmatmul.mubr.f32.gmra.mxu0 %v549
    %v688 = vpop.f32.mrf.mxu0
    %v689 = vadd.f32 0.0, %v688
    %v690 = vpop.f32.mrf.mxu0
    %691 = vmatprep.mubr.f32.mxu0 0.0
    %692 = vmatmul.mubr.f32.gmra.mxu0 %v552
    %v693 = vpop.f32.mrf.mxu0
    %v694 = vadd.f32 0.0, %v693
    %v695 = vpop.f32.mrf.mxu0
    %696 = vmatprep.mubr.f32.mxu0 0.0
    %697 = vmatmul.mubr.f32.gmra.mxu0 %v555
    %v698 = vpop.f32.mrf.mxu0
    %v699 = vadd.f32 0.0, %v698
    %v700 = vpop.f32.mrf.mxu0
    %701 = vdwg.mxu0
    %v702 = vadd.f32 %v394, %v624
    %v703 = vadd.f32 %v399, %v629
    %v704 = vadd.f32 %v404, %v634
    %v705 = vadd.f32 %v409, %v639
    %v706 = vadd.f32 %v414, %v644
    %v707 = vadd.f32 %v419, %v649
    %v708 = vadd.f32 %v424, %v654
    %v709 = vadd.f32 %v429, %v659
    %v710 = vadd.f32 %v434, %v664
    %v711 = vadd.f32 %v439, %v669
    %v712 = vadd.f32 %v444, %v674
    %v713 = vadd.f32 %v449, %v679
    %v714 = vadd.f32 %v454, %v684
    %v715 = vadd.f32 %v459, %v689
    %v716 = vadd.f32 %v464, %v694
    %v717 = vadd.f32 %v469, %v699
    %v718 = vrot.slane %v26, 3
    %v719 = vrot.slane %v27, 3
    %v720 = vrot.slane %v28, 3
    %v721 = vrot.slane %v29, 3
    %v722 = vrot.slane %v30, 3
    %v723 = vrot.slane %v31, 3
    %v724 = vrot.slane %v32, 3
    %v725 = vrot.slane %v33, 3
    %v726 = vrot.slane %v34, 3
    %v727 = vrot.slane %v35, 3
    %v728 = vrot.slane %v36, 3
    %v729 = vrot.slane %v37, 3
    %v730 = vrot.slane %v38, 3
    %v731 = vrot.slane %v39, 3
    %v732 = vrot.slane %v40, 3
    %v733 = vrot.slane %v41, 3
    %vm734 = vcmp.lt.s32.totalorder %v63, 5
    %v735 = vsel %vm734, %v732, %v733
    %v736 = vsel %vm734, %v731, %v732
    %v737 = vsel %vm734, %v730, %v731
    %v738 = vsel %vm734, %v729, %v730
    %v739 = vsel %vm734, %v728, %v729
    %v740 = vsel %vm734, %v727, %v728
    %v741 = vsel %vm734, %v726, %v727
    %v742 = vsel %vm734, %v725, %v726
    %v743 = vsel %vm734, %v724, %v725
    %v744 = vsel %vm734, %v723, %v724
    %v745 = vsel %vm734, %v722, %v723
    %v746 = vsel %vm734, %v721, %v722
    %v747 = vsel %vm734, %v720, %v721
    %v748 = vsel %vm734, %v719, %v720
    %v749 = vsel %vm734, %v718, %v719
    %v750 = vsel %vm734, %v733, %v718
    %v751 = vld [vmem:[#allocation2 + $0x60] sm:$0xff]
    %v752 = vld [vmem:[#allocation2 + $0x68] sm:$0xff]
    %v753 = vld [vmem:[#allocation2 + $0x70] sm:$0xff]
    %v754 = vld [vmem:[#allocation2 + $0x78] sm:$0xff]
    %v756 = vsel %vm85, %v749, 0
    %v759 = vsel %vm85, %v748, 0
    %v762 = vsel %vm85, %v747, 0
    %v765 = vsel %vm85, %v746, 0
    %v768 = vsel %vm85, %v745, 0
    %v771 = vsel %vm85, %v744, 0
    %v774 = vsel %vm85, %v743, 0
    %v777 = vsel %vm85, %v742, 0
    %v780 = vsel %vm85, %v741, 0
    %v783 = vsel %vm85, %v740, 0
    %v786 = vsel %vm85, %v739, 0
    %v789 = vsel %vm85, %v738, 0
    %v792 = vsel %vm85, %v737, 0
    %v795 = vsel %vm85, %v736, 0
    %v798 = vsel %vm85, %v735, 0
    %v801 = vsel %vm85, %v750, 0
    %803 = vmatprep.subr.mxu0 0.0
    %804 = vmatpush1.msra.mxu0 0.0
    %805 = vmatprep.subr.mxu0 0.0
    %806 = vmatpush1.msra.mxu0 0.0
    %807 = vmatprep.subr.mxu0 0.0
    %808 = vmatpush1.msra.mxu0 0.0
    %809 = vmatprep.subr.mxu0 0.0
    %810 = vmatpush1.msra.mxu0 0.0
    %811 = vmatprep.subr.mxu0 0.0
    %812 = vmatpush1.msra.mxu0 0.0
    %813 = vmatprep.subr.mxu0 0.0
    %814 = vmatpush1.msra.mxu0 0.0
    %815 = vmatprep.subr.mxu0 0.0
    %816 = vmatpush1.msra.mxu0 0.0
    %817 = vmatprep.subr.mxu0 0.0
    %818 = vmatpush1.msra.mxu0 0.0
    %819 = vmatprep.subr.mxu0 0.0
    %820 = vmatpush1.msra.mxu0 0.0
    %821 = vmatprep.subr.mxu0 0.0
    %822 = vmatpush1.msra.mxu0 0.0
    %823 = vmatprep.subr.mxu0 0.0
    %824 = vmatpush1.msra.mxu0 0.0
    %825 = vmatprep.subr.mxu0 0.0
    %826 = vmatpush1.msra.mxu0 0.0
    %827 = vmatprep.subr.mxu0 0.0
    %828 = vmatpush1.msra.mxu0 %v754
    %829 = vmatprep.subr.mxu0 0.0
    %830 = vmatpush1.msra.mxu0 %v753
    %831 = vmatprep.subr.mxu0 0.0
    %832 = vmatpush1.msra.mxu0 %v752
    %833 = vmatprep.subr.mxu0 0.0
    %834 = vmatpush1.msra.mxu0 %v751
    %835 = vmatprep.subr.mxu0 0.0
    %836 = vmatpush2.msra.mxu0 0.0
    %837 = vmatprep.subr.mxu0 0.0
    %838 = vmatpush2.msra.mxu0 0.0
    %839 = vmatprep.subr.mxu0 0.0
    %840 = vmatpush2.msra.mxu0 0.0
    %841 = vmatprep.subr.mxu0 0.0
    %842 = vmatpush2.msra.mxu0 0.0
    %843 = vmatprep.subr.mxu0 0.0
    %844 = vmatpush2.msra.mxu0 0.0
    %845 = vmatprep.subr.mxu0 0.0
    %846 = vmatpush2.msra.mxu0 0.0
    %847 = vmatprep.subr.mxu0 0.0
    %848 = vmatpush2.msra.mxu0 0.0
    %849 = vmatprep.subr.mxu0 0.0
    %850 = vmatpush2.msra.mxu0 0.0
    %851 = vmatprep.subr.mxu0 0.0
    %852 = vmatpush2.msra.mxu0 0.0
    %853 = vmatprep.subr.mxu0 0.0
    %854 = vmatpush2.msra.mxu0 0.0
    %855 = vmatprep.subr.mxu0 0.0
    %856 = vmatpush2.msra.mxu0 0.0
    %857 = vmatprep.subr.mxu0 0.0
    %858 = vmatpush2.msra.mxu0 0.0
    %859 = vmatprep.subr.mxu0 0.0
    %860 = vmatpush2.msra.mxu0 0.0
    %861 = vmatprep.subr.mxu0 0.0
    %862 = vmatpush2.msra.mxu0 0.0
    %863 = vmatprep.subr.mxu0 0.0
    %864 = vmatpush2.msra.mxu0 0.0
    %865 = vmatprep.subr.mxu0 0.0
    %866 = vmatpush2.msra.mxu0 0.0
    %867 = vmatprep.mubr.f32.mxu0 0.0
    %868 = vmatmul.mubr.f32.gmra.mxu0 %v756
    %v869 = vpop.f32.mrf.mxu0
    %v870 = vadd.f32 0.0, %v869
    %v871 = vpop.f32.mrf.mxu0
    %872 = vmatprep.mubr.f32.mxu0 0.0
    %873 = vmatmul.mubr.f32.gmra.mxu0 %v759
    %v874 = vpop.f32.mrf.mxu0
    %v875 = vadd.f32 0.0, %v874
    %v876 = vpop.f32.mrf.mxu0
    %877 = vmatprep.mubr.f32.mxu0 0.0
    %878 = vmatmul.mubr.f32.gmra.mxu0 %v762
    %v879 = vpop.f32.mrf.mxu0
    %v880 = vadd.f32 0.0, %v879
    %v881 = vpop.f32.mrf.mxu0
    %882 = vmatprep.mubr.f32.mxu0 0.0
    %883 = vmatmul.mubr.f32.gmra.mxu0 %v765
    %v884 = vpop.f32.mrf.mxu0
    %v885 = vadd.f32 0.0, %v884
    %v886 = vpop.f32.mrf.mxu0
    %887 = vmatprep.mubr.f32.mxu0 0.0
    %888 = vmatmul.mubr.f32.gmra.mxu0 %v768
    %v889 = vpop.f32.mrf.mxu0
    %v890 = vadd.f32 0.0, %v889
    %v891 = vpop.f32.mrf.mxu0
    %892 = vmatprep.mubr.f32.mxu0 0.0
    %893 = vmatmul.mubr.f32.gmra.mxu0 %v771
    %v894 = vpop.f32.mrf.mxu0
    %v895 = vadd.f32 0.0, %v894
    %v896 = vpop.f32.mrf.mxu0
    %897 = vmatprep.mubr.f32.mxu0 0.0
    %898 = vmatmul.mubr.f32.gmra.mxu0 %v774
    %v899 = vpop.f32.mrf.mxu0
    %v900 = vadd.f32 0.0, %v899
    %v901 = vpop.f32.mrf.mxu0
    %902 = vmatprep.mubr.f32.mxu0 0.0
    %903 = vmatmul.mubr.f32.gmra.mxu0 %v777
    %v904 = vpop.f32.mrf.mxu0
    %v905 = vadd.f32 0.0, %v904
    %v906 = vpop.f32.mrf.mxu0
    %907 = vmatprep.mubr.f32.mxu0 0.0
    %908 = vmatmul.mubr.f32.gmra.mxu0 %v780
    %v909 = vpop.f32.mrf.mxu0
    %v910 = vadd.f32 0.0, %v909
    %v911 = vpop.f32.mrf.mxu0
    %912 = vmatprep.mubr.f32.mxu0 0.0
    %913 = vmatmul.mubr.f32.gmra.mxu0 %v783
    %v914 = vpop.f32.mrf.mxu0
    %v915 = vadd.f32 0.0, %v914
    %v916 = vpop.f32.mrf.mxu0
    %917 = vmatprep.mubr.f32.mxu0 0.0
    %918 = vmatmul.mubr.f32.gmra.mxu0 %v786
    %v919 = vpop.f32.mrf.mxu0
    %v920 = vadd.f32 0.0, %v919
    %v921 = vpop.f32.mrf.mxu0
    %922 = vmatprep.mubr.f32.mxu0 0.0
    %923 = vmatmul.mubr.f32.gmra.mxu0 %v789
    %v924 = vpop.f32.mrf.mxu0
    %v925 = vadd.f32 0.0, %v924
    %v926 = vpop.f32.mrf.mxu0
    %927 = vmatprep.mubr.f32.mxu0 0.0
    %928 = vmatmul.mubr.f32.gmra.mxu0 %v792
    %v929 = vpop.f32.mrf.mxu0
    %v930 = vadd.f32 0.0, %v929
    %v931 = vpop.f32.mrf.mxu0
    %932 = vmatprep.mubr.f32.mxu0 0.0
    %933 = vmatmul.mubr.f32.gmra.mxu0 %v795
    %v934 = vpop.f32.mrf.mxu0
    %v935 = vadd.f32 0.0, %v934
    %v936 = vpop.f32.mrf.mxu0
    %937 = vmatprep.mubr.f32.mxu0 0.0
    %938 = vmatmul.mubr.f32.gmra.mxu0 %v798
    %v939 = vpop.f32.mrf.mxu0
    %v940 = vadd.f32 0.0, %v939
    %v941 = vpop.f32.mrf.mxu0
    %942 = vmatprep.mubr.f32.mxu0 0.0
    %943 = vmatmul.mubr.f32.gmra.mxu0 %v801
    %v944 = vpop.f32.mrf.mxu0
    %v945 = vadd.f32 0.0, %v944
    %v946 = vpop.f32.mrf.mxu0
    %947 = vdwg.mxu0
    %v948 = vadd.f32 %v702, %v870
    %v949 = vadd.f32 %v703, %v875
    %v950 = vadd.f32 %v704, %v880
    %v951 = vadd.f32 %v705, %v885
    %v952 = vadd.f32 %v706, %v890
    %v953 = vadd.f32 %v707, %v895
    %v954 = vadd.f32 %v708, %v900
    %v955 = vadd.f32 %v709, %v905
    %v956 = vadd.f32 %v710, %v910
    %v957 = vadd.f32 %v711, %v915
    %v958 = vadd.f32 %v712, %v920
    %v959 = vadd.f32 %v713, %v925
    %v960 = vadd.f32 %v714, %v930
    %v961 = vadd.f32 %v715, %v935
    %v962 = vadd.f32 %v716, %v940
    %v963 = vadd.f32 %v717, %v945
    %v964 = vrot.slane %v26, 4
    %v965 = vrot.slane %v27, 4
    %v966 = vrot.slane %v28, 4
    %v967 = vrot.slane %v29, 4
    %v968 = vrot.slane %v30, 4
    %v969 = vrot.slane %v31, 4
    %v970 = vrot.slane %v32, 4
    %v971 = vrot.slane %v33, 4
    %v972 = vrot.slane %v34, 4
    %v973 = vrot.slane %v35, 4
    %v974 = vrot.slane %v36, 4
    %v975 = vrot.slane %v37, 4
    %v976 = vrot.slane %v38, 4
    %v977 = vrot.slane %v39, 4
    %v978 = vrot.slane %v40, 4
    %v979 = vrot.slane %v41, 4
    %vm980 = vcmp.lt.s32.totalorder %v63, 4
    %v981 = vsel %vm980, %v978, %v979
    %v982 = vsel %vm980, %v977, %v978
    %v983 = vsel %vm980, %v976, %v977
    %v984 = vsel %vm980, %v975, %v976
    %v985 = vsel %vm980, %v974, %v975
    %v986 = vsel %vm980, %v973, %v974
    %v987 = vsel %vm980, %v972, %v973
    %v988 = vsel %vm980, %v971, %v972
    %v989 = vsel %vm980, %v970, %v971
    %v990 = vsel %vm980, %v969, %v970
    %v991 = vsel %vm980, %v968, %v969
    %v992 = vsel %vm980, %v967, %v968
    %v993 = vsel %vm980, %v966, %v967
    %v994 = vsel %vm980, %v965, %v966
    %v995 = vsel %vm980, %v964, %v965
    %v996 = vsel %vm980, %v979, %v964
    %v997 = vld [vmem:[#allocation2 + $0x80] sm:$0xff]
    %v998 = vld [vmem:[#allocation2 + $0x88] sm:$0xff]
    %v999 = vld [vmem:[#allocation2 + $0x90] sm:$0xff]
    %v1000 = vld [vmem:[#allocation2 + $0x98] sm:$0xff]
    %v1002 = vsel %vm85, %v995, 0
    %v1005 = vsel %vm85, %v994, 0
    %v1008 = vsel %vm85, %v993, 0
    %v1011 = vsel %vm85, %v992, 0
    %v1014 = vsel %vm85, %v991, 0
    %v1017 = vsel %vm85, %v990, 0
    %v1020 = vsel %vm85, %v989, 0
    %v1023 = vsel %vm85, %v988, 0
    %v1026 = vsel %vm85, %v987, 0
    %v1029 = vsel %vm85, %v986, 0
    %v1032 = vsel %vm85, %v985, 0
    %v1035 = vsel %vm85, %v984, 0
    %v1038 = vsel %vm85, %v983, 0
    %v1041 = vsel %vm85, %v982, 0
    %v1044 = vsel %vm85, %v981, 0
    %v1047 = vsel %vm85, %v996, 0
    %1049 = vmatprep.subr.mxu0 0.0
    %1050 = vmatpush1.msra.mxu0 0.0
    %1051 = vmatprep.subr.mxu0 0.0
    %1052 = vmatpush1.msra.mxu0 0.0
    %1053 = vmatprep.subr.mxu0 0.0
    %1054 = vmatpush1.msra.mxu0 0.0
    %1055 = vmatprep.subr.mxu0 0.0
    %1056 = vmatpush1.msra.mxu0 0.0
    %1057 = vmatprep.subr.mxu0 0.0
    %1058 = vmatpush1.msra.mxu0 0.0
    %1059 = vmatprep.subr.mxu0 0.0
    %1060 = vmatpush1.msra.mxu0 0.0
    %1061 = vmatprep.subr.mxu0 0.0
    %1062 = vmatpush1.msra.mxu0 0.0
    %1063 = vmatprep.subr.mxu0 0.0
    %1064 = vmatpush1.msra.mxu0 0.0
    %1065 = vmatprep.subr.mxu0 0.0
    %1066 = vmatpush1.msra.mxu0 0.0
    %1067 = vmatprep.subr.mxu0 0.0
    %1068 = vmatpush1.msra.mxu0 0.0
    %1069 = vmatprep.subr.mxu0 0.0
    %1070 = vmatpush1.msra.mxu0 0.0
    %1071 = vmatprep.subr.mxu0 0.0
    %1072 = vmatpush1.msra.mxu0 0.0
    %1073 = vmatprep.subr.mxu0 0.0
    %1074 = vmatpush1.msra.mxu0 %v1000
    %1075 = vmatprep.subr.mxu0 0.0
    %1076 = vmatpush1.msra.mxu0 %v999
    %1077 = vmatprep.subr.mxu0 0.0
    %1078 = vmatpush1.msra.mxu0 %v998
    %1079 = vmatprep.subr.mxu0 0.0
    %1080 = vmatpush1.msra.mxu0 %v997
    %1081 = vmatprep.subr.mxu0 0.0
    %1082 = vmatpush2.msra.mxu0 0.0
    %1083 = vmatprep.subr.mxu0 0.0
    %1084 = vmatpush2.msra.mxu0 0.0
    %1085 = vmatprep.subr.mxu0 0.0
    %1086 = vmatpush2.msra.mxu0 0.0
    %1087 = vmatprep.subr.mxu0 0.0
    %1088 = vmatpush2.msra.mxu0 0.0
    %1089 = vmatprep.subr.mxu0 0.0
    %1090 = vmatpush2.msra.mxu0 0.0
    %1091 = vmatprep.subr.mxu0 0.0
    %1092 = vmatpush2.msra.mxu0 0.0
    %1093 = vmatprep.subr.mxu0 0.0
    %1094 = vmatpush2.msra.mxu0 0.0
    %1095 = vmatprep.subr.mxu0 0.0
    %1096 = vmatpush2.msra.mxu0 0.0
    %1097 = vmatprep.subr.mxu0 0.0
    %1098 = vmatpush2.msra.mxu0 0.0
    %1099 = vmatprep.subr.mxu0 0.0
    %1100 = vmatpush2.msra.mxu0 0.0
    %1101 = vmatprep.subr.mxu0 0.0
    %1102 = vmatpush2.msra.mxu0 0.0
    %1103 = vmatprep.subr.mxu0 0.0
    %1104 = vmatpush2.msra.mxu0 0.0
    %1105 = vmatprep.subr.mxu0 0.0
    %1106 = vmatpush2.msra.mxu0 0.0
    %1107 = vmatprep.subr.mxu0 0.0
    %1108 = vmatpush2.msra.mxu0 0.0
    %1109 = vmatprep.subr.mxu0 0.0
    %1110 = vmatpush2.msra.mxu0 0.0
    %1111 = vmatprep.subr.mxu0 0.0
    %1112 = vmatpush2.msra.mxu0 0.0
    %1113 = vmatprep.mubr.f32.mxu0 0.0
    %1114 = vmatmul.mubr.f32.gmra.mxu0 %v1002
    %v1115 = vpop.f32.mrf.mxu0
    %v1116 = vadd.f32 0.0, %v1115
    %v1117 = vpop.f32.mrf.mxu0
    %1118 = vmatprep.mubr.f32.mxu0 0.0
    %1119 = vmatmul.mubr.f32.gmra.mxu0 %v1005
    %v1120 = vpop.f32.mrf.mxu0
    %v1121 = vadd.f32 0.0, %v1120
    %v1122 = vpop.f32.mrf.mxu0
    %1123 = vmatprep.mubr.f32.mxu0 0.0
    %1124 = vmatmul.mubr.f32.gmra.mxu0 %v1008
    %v1125 = vpop.f32.mrf.mxu0
    %v1126 = vadd.f32 0.0, %v1125
    %v1127 = vpop.f32.mrf.mxu0
    %1128 = vmatprep.mubr.f32.mxu0 0.0
    %1129 = vmatmul.mubr.f32.gmra.mxu0 %v1011
    %v1130 = vpop.f32.mrf.mxu0
    %v1131 = vadd.f32 0.0, %v1130
    %v1132 = vpop.f32.mrf.mxu0
    %1133 = vmatprep.mubr.f32.mxu0 0.0
    %1134 = vmatmul.mubr.f32.gmra.mxu0 %v1014
    %v1135 = vpop.f32.mrf.mxu0
    %v1136 = vadd.f32 0.0, %v1135
    %v1137 = vpop.f32.mrf.mxu0
    %1138 = vmatprep.mubr.f32.mxu0 0.0
    %1139 = vmatmul.mubr.f32.gmra.mxu0 %v1017
    %v1140 = vpop.f32.mrf.mxu0
    %v1141 = vadd.f32 0.0, %v1140
    %v1142 = vpop.f32.mrf.mxu0
    %1143 = vmatprep.mubr.f32.mxu0 0.0
    %1144 = vmatmul.mubr.f32.gmra.mxu0 %v1020
    %v1145 = vpop.f32.mrf.mxu0
    %v1146 = vadd.f32 0.0, %v1145
    %v1147 = vpop.f32.mrf.mxu0
    %1148 = vmatprep.mubr.f32.mxu0 0.0
    %1149 = vmatmul.mubr.f32.gmra.mxu0 %v1023
    %v1150 = vpop.f32.mrf.mxu0
    %v1151 = vadd.f32 0.0, %v1150
    %v1152 = vpop.f32.mrf.mxu0
    %1153 = vmatprep.mubr.f32.mxu0 0.0
    %1154 = vmatmul.mubr.f32.gmra.mxu0 %v1026
    %v1155 = vpop.f32.mrf.mxu0
    %v1156 = vadd.f32 0.0, %v1155
    %v1157 = vpop.f32.mrf.mxu0
    %1158 = vmatprep.mubr.f32.mxu0 0.0
    %1159 = vmatmul.mubr.f32.gmra.mxu0 %v1029
    %v1160 = vpop.f32.mrf.mxu0
    %v1161 = vadd.f32 0.0, %v1160
    %v1162 = vpop.f32.mrf.mxu0
    %1163 = vmatprep.mubr.f32.mxu0 0.0
    %1164 = vmatmul.mubr.f32.gmra.mxu0 %v1032
    %v1165 = vpop.f32.mrf.mxu0
    %v1166 = vadd.f32 0.0, %v1165
    %v1167 = vpop.f32.mrf.mxu0
    %1168 = vmatprep.mubr.f32.mxu0 0.0
    %1169 = vmatmul.mubr.f32.gmra.mxu0 %v1035
    %v1170 = vpop.f32.mrf.mxu0
    %v1171 = vadd.f32 0.0, %v1170
    %v1172 = vpop.f32.mrf.mxu0
    %1173 = vmatprep.mubr.f32.mxu0 0.0
    %1174 = vmatmul.mubr.f32.gmra.mxu0 %v1038
    %v1175 = vpop.f32.mrf.mxu0
    %v1176 = vadd.f32 0.0, %v1175
    %v1177 = vpop.f32.mrf.mxu0
    %1178 = vmatprep.mubr.f32.mxu0 0.0
    %1179 = vmatmul.mubr.f32.gmra.mxu0 %v1041
    %v1180 = vpop.f32.mrf.mxu0
    %v1181 = vadd.f32 0.0, %v1180
    %v1182 = vpop.f32.mrf.mxu0
    %1183 = vmatprep.mubr.f32.mxu0 0.0
    %1184 = vmatmul.mubr.f32.gmra.mxu0 %v1044
    %v1185 = vpop.f32.mrf.mxu0
    %v1186 = vadd.f32 0.0, %v1185
    %v1187 = vpop.f32.mrf.mxu0
    %1188 = vmatprep.mubr.f32.mxu0 0.0
    %1189 = vmatmul.mubr.f32.gmra.mxu0 %v1047
    %v1190 = vpop.f32.mrf.mxu0
    %v1191 = vadd.f32 0.0, %v1190
    %v1192 = vpop.f32.mrf.mxu0
    %1193 = vdwg.mxu0
    %v1194 = vadd.f32 %v948, %v1116
    %v1195 = vadd.f32 %v949, %v1121
    %v1196 = vadd.f32 %v950, %v1126
    %v1197 = vadd.f32 %v951, %v1131
    %v1198 = vadd.f32 %v952, %v1136
    %v1199 = vadd.f32 %v953, %v1141
    %v1200 = vadd.f32 %v954, %v1146
    %v1201 = vadd.f32 %v955, %v1151
    %v1202 = vadd.f32 %v956, %v1156
    %v1203 = vadd.f32 %v957, %v1161
    %v1204 = vadd.f32 %v958, %v1166
    %v1205 = vadd.f32 %v959, %v1171
    %v1206 = vadd.f32 %v960, %v1176
    %v1207 = vadd.f32 %v961, %v1181
    %v1208 = vadd.f32 %v962, %v1186
    %v1209 = vadd.f32 %v963, %v1191
    %v1210 = vld [vmem:[#allocation2 + $0xb0] sm:$0x1]
    %v1211 = vlaneseq
    %v1212 = vshrl.u32 %v1211, 7
    %v1213 = vsub.s32 0, %v1212
    %v1214 = vrot.slane %v1210, %v1213
    %v1215 = vadd.f32 %v1194, %v1214
    %v1216 = vadd.f32 %v1195, %v1214
    %v1217 = vadd.f32 %v1196, %v1214
    %v1218 = vadd.f32 %v1197, %v1214
    %v1219 = vadd.f32 %v1198, %v1214
    %v1220 = vadd.f32 %v1199, %v1214
    %v1221 = vadd.f32 %v1200, %v1214
    %v1222 = vadd.f32 %v1201, %v1214
    %v1223 = vadd.f32 %v1202, %v1214
    %v1224 = vadd.f32 %v1203, %v1214
    %v1225 = vadd.f32 %v1204, %v1214
    %v1226 = vadd.f32 %v1205, %v1214
    %v1227 = vadd.f32 %v1206, %v1214
    %v1228 = vadd.f32 %v1207, %v1214
    %v1229 = vadd.f32 %v1208, %v1214
    %v1230 = vadd.f32 %v1209, %v1214
    %v1231 = vmax.f32 %v1215, 0.0
    %v1232 = vmax.f32 %v1216, 0.0
    %v1233 = vmax.f32 %v1217, 0.0
    %v1234 = vmax.f32 %v1218, 0.0
    %v1235 = vmax.f32 %v1219, 0.0
    %v1236 = vmax.f32 %v1220, 0.0
    %v1237 = vmax.f32 %v1221, 0.0
    %v1238 = vmax.f32 %v1222, 0.0
    %v1239 = vmax.f32 %v1223, 0.0
    %v1240 = vmax.f32 %v1224, 0.0
    %v1241 = vmax.f32 %v1225, 0.0
    %v1242 = vmax.f32 %v1226, 0.0
    %v1243 = vmax.f32 %v1227, 0.0
    %v1244 = vmax.f32 %v1228, 0.0
    %v1245 = vmax.f32 %v1229, 0.0
    %v1246 = vmax.f32 %v1230, 0.0
    %v1247 = vld [vmem:[#allocation2 + $0xa0] sm:$0xff]
    %v1248 = vld [vmem:[#allocation2 + $0xa8] sm:$0xff]
    %v1249 = vmul.f32 %v1231, %v1247
    %v1250 = vmul.f32 %v1232, %v1248
    %v1251 = vmul.f32 %v1233, %v1247
    %v1252 = vmul.f32 %v1234, %v1248
    %v1253 = vmul.f32 %v1235, %v1247
    %v1254 = vmul.f32 %v1236, %v1248
    %v1255 = vmul.f32 %v1237, %v1247
    %v1256 = vmul.f32 %v1238, %v1248
    %v1257 = vmul.f32 %v1239, %v1247
    %v1258 = vmul.f32 %v1240, %v1248
    %v1259 = vmul.f32 %v1241, %v1247
    %v1260 = vmul.f32 %v1242, %v1248
    %v1261 = vmul.f32 %v1243, %v1247
    %v1262 = vmul.f32 %v1244, %v1248
    %v1263 = vmul.f32 %v1245, %v1247
    %v1264 = vmul.f32 %v1246, %v1248
    %v1265 = vmax.f32 %v1249, %v1250
    %v1266 = vrot.slane %v1265, 4
    %v1267 = vmax.f32 %v1265, %v1266
    %v1268 = vrot.slane %v1267, 2
    %v1269 = vmax.f32 %v1267, %v1268
    %v1270 = vrot.slane %v1269, 1
    %v1271 = vmax.f32 %v1269, %v1270
    %v1272 = vmax.f32 %v1251, %v1252
    %v1273 = vrot.slane %v1272, 4
    %v1274 = vmax.f32 %v1272, %v1273
    %v1275 = vrot.slane %v1274, 2
    %v1276 = vmax.f32 %v1274, %v1275
    %v1277 = vrot.slane %v1276, 1
    %v1278 = vmax.f32 %v1276, %v1277
    %v1279 = vmax.f32 %v1253, %v1254
    %v1280 = vrot.slane %v1279, 4
    %v1281 = vmax.f32 %v1279, %v1280
    %v1282 = vrot.slane %v1281, 2
    %v1283 = vmax.f32 %v1281, %v1282
    %v1284 = vrot.slane %v1283, 1
    %v1285 = vmax.f32 %v1283, %v1284
    %v1286 = vmax.f32 %v1255, %v1256
    %v1287 = vrot.slane %v1286, 4
    %v1288 = vmax.f32 %v1286, %v1287
    %v1289 = vrot.slane %v1288, 2
    %v1290 = vmax.f32 %v1288, %v1289
    %v1291 = vrot.slane %v1290, 1
    %v1292 = vmax.f32 %v1290, %v1291
    %v1293 = vmax.f32 %v1257, %v1258
    %v1294 = vrot.slane %v1293, 4
    %v1295 = vmax.f32 %v1293, %v1294
    %v1296 = vrot.slane %v1295, 2
    %v1297 = vmax.f32 %v1295, %v1296
    %v1298 = vrot.slane %v1297, 1
    %v1299 = vmax.f32 %v1297, %v1298
    %v1300 = vmax.f32 %v1259, %v1260
    %v1301 = vrot.slane %v1300, 4
    %v1302 = vmax.f32 %v1300, %v1301
    %v1303 = vrot.slane %v1302, 2
    %v1304 = vmax.f32 %v1302, %v1303
    %v1305 = vrot.slane %v1304, 1
    %v1306 = vmax.f32 %v1304, %v1305
    %v1307 = vmax.f32 %v1261, %v1262
    %v1308 = vrot.slane %v1307, 4
    %v1309 = vmax.f32 %v1307, %v1308
    %v1310 = vrot.slane %v1309, 2
    %v1311 = vmax.f32 %v1309, %v1310
    %v1312 = vrot.slane %v1311, 1
    %v1313 = vmax.f32 %v1311, %v1312
    %v1314 = vmax.f32 %v1263, %v1264
    %v1315 = vrot.slane %v1314, 4
    %v1316 = vmax.f32 %v1314, %v1315
    %v1317 = vrot.slane %v1316, 2
    %v1318 = vmax.f32 %v1316, %v1317
    %v1319 = vrot.slane %v1318, 1
    %v1320 = vmax.f32 %v1318, %v1319
    %v1321 = vld [vmem:[#allocation2 + $0xb1] sm:$0x1]
    %v1322 = vld [vmem:[#allocation2 + $0xb8] sm:$0x1]
    %1324 = vset.pattern.permute.xlu0 0
    %1325 = vperm.xlu0 %1324, %v1271
    %v1326 = vpop.permute.xlu0 %1325
    %1329 = vset.pattern.permute.xlu0 0
    %1330 = vperm.xlu0 %1329, %v1278
    %v1331 = vpop.permute.xlu0 %1330
    %1334 = vset.pattern.permute.xlu0 0
    %1335 = vperm.xlu0 %1334, %v1285
    %v1336 = vpop.permute.xlu0 %1335
    %1339 = vset.pattern.permute.xlu0 0
    %1340 = vperm.xlu0 %1339, %v1292
    %v1341 = vpop.permute.xlu0 %1340
    %1344 = vset.pattern.permute.xlu0 0
    %1345 = vperm.xlu0 %1344, %v1299
    %v1346 = vpop.permute.xlu0 %1345
    %1349 = vset.pattern.permute.xlu0 0
    %1350 = vperm.xlu0 %1349, %v1306
    %v1351 = vpop.permute.xlu0 %1350
    %1354 = vset.pattern.permute.xlu0 0
    %1355 = vperm.xlu0 %1354, %v1313
    %v1356 = vpop.permute.xlu0 %1355
    %1359 = vset.pattern.permute.xlu0 0
    %1360 = vperm.xlu0 %1359, %v1320
    %v1361 = vpop.permute.xlu0 %1360
    %v1363 = vlaneseq
    %v1364 = vshrl.u32 %v1363, 7
    %v1365 = vsub.s32 0, %v1364
    %v1366 = vrot.slane %v1322, %v1365
    %v1367 = vmul.f32 %v1326, %v1366
    %v1368 = vmul.f32 %v1331, %v1366
    %v1369 = vmul.f32 %v1336, %v1366
    %v1370 = vmul.f32 %v1341, %v1366
    %v1371 = vmul.f32 %v1346, %v1366
    %v1372 = vmul.f32 %v1351, %v1366
    %v1373 = vmul.f32 %v1356, %v1366
    %v1374 = vmul.f32 %v1361, %v1366
    %v1375 = vlaneseq
    %v1376 = vshrl.u32 %v1375, 7
    %v1377 = vsub.s32 0, %v1376
    %v1378 = vrot.slane %v1321, %v1377
    %v1387 = vrot.slane %v1368, 7
    %vm1388 = vcmask 1041409
    %v1389 = vsel %vm1388, %v1387, %v1367
    %v1390 = vrot.slane %v1369, 6
    %vm1391 = vcmask 1042434
    %v1392 = vsel %vm1391, %v1390, %v1389
    %v1393 = vrot.slane %v1370, 5
    %vm1394 = vcmask 1043459
    %v1395 = vsel %vm1394, %v1393, %v1392
    %v1396 = vrot.slane %v1371, 4
    %vm1397 = vcmask 1044484
    %v1398 = vsel %vm1397, %v1396, %v1395
    %v1399 = vrot.slane %v1372, 3
    %vm1400 = vcmask 1045509
    %v1401 = vsel %vm1400, %v1399, %v1398
    %v1402 = vrot.slane %v1373, 2
    %vm1403 = vcmask 1046534
    %v1404 = vsel %vm1403, %v1402, %v1401
    %v1405 = vrot.slane %v1374, 1
    %vm1406 = vcmask 1047559
    %v1407 = vsel %vm1406, %v1405, %v1404
    %v1409 = vadd.f32 %v1378, %v1407
    %v1410 = vld [vmem:[#allocation2 + $0xb9] sm:$0x1]
    %1411 = vset.pattern.permute.xlu0 1
    %1412 = vperm.xlu0 %1411, %v1271
    %v1413 = vpop.permute.xlu0 %1412
    %1415 = vset.pattern.permute.xlu0 1
    %1416 = vperm.xlu0 %1415, %v1278
    %v1417 = vpop.permute.xlu0 %1416
    %1419 = vset.pattern.permute.xlu0 1
    %1420 = vperm.xlu0 %1419, %v1285
    %v1421 = vpop.permute.xlu0 %1420
    %1423 = vset.pattern.permute.xlu0 1
    %1424 = vperm.xlu0 %1423, %v1292
    %v1425 = vpop.permute.xlu0 %1424
    %1427 = vset.pattern.permute.xlu0 1
    %1428 = vperm.xlu0 %1427, %v1299
    %v1429 = vpop.permute.xlu0 %1428
    %1431 = vset.pattern.permute.xlu0 1
    %1432 = vperm.xlu0 %1431, %v1306
    %v1433 = vpop.permute.xlu0 %1432
    %1435 = vset.pattern.permute.xlu0 1
    %1436 = vperm.xlu0 %1435, %v1313
    %v1437 = vpop.permute.xlu0 %1436
    %1439 = vset.pattern.permute.xlu0 1
    %1440 = vperm.xlu0 %1439, %v1320
    %v1441 = vpop.permute.xlu0 %1440
    %v1443 = vlaneseq
    %v1444 = vshrl.u32 %v1443, 7
    %v1445 = vsub.s32 0, %v1444
    %v1446 = vrot.slane %v1410, %v1445
    %v1447 = vmul.f32 %v1413, %v1446
    %v1448 = vmul.f32 %v1417, %v1446
    %v1449 = vmul.f32 %v1421, %v1446
    %v1450 = vmul.f32 %v1425, %v1446
    %v1451 = vmul.f32 %v1429, %v1446
    %v1452 = vmul.f32 %v1433, %v1446
    %v1453 = vmul.f32 %v1437, %v1446
    %v1454 = vmul.f32 %v1441, %v1446
    %v1463 = vrot.slane %v1448, 7
    %v1464 = vsel %vm1388, %v1463, %v1447
    %v1465 = vrot.slane %v1449, 6
    %v1466 = vsel %vm1391, %v1465, %v1464
    %v1467 = vrot.slane %v1450, 5
    %v1468 = vsel %vm1394, %v1467, %v1466
    %v1469 = vrot.slane %v1451, 4
    %v1470 = vsel %vm1397, %v1469, %v1468
    %v1471 = vrot.slane %v1452, 3
    %v1472 = vsel %vm1400, %v1471, %v1470
    %v1473 = vrot.slane %v1453, 2
    %v1474 = vsel %vm1403, %v1473, %v1472
    %v1475 = vrot.slane %v1454, 1
    %v1476 = vsel %vm1406, %v1475, %v1474
    %v1478 = vadd.f32 %v1409, %v1476
    %v1479 = vld [vmem:[#allocation2 + $0xba] sm:$0x1]
    %1480 = vset.pattern.permute.xlu0 2
    %1481 = vperm.xlu0 %1480, %v1271
    %v1482 = vpop.permute.xlu0 %1481
    %1484 = vset.pattern.permute.xlu0 2
    %1485 = vperm.xlu0 %1484, %v1278
    %v1486 = vpop.permute.xlu0 %1485
    %1488 = vset.pattern.permute.xlu0 2
    %1489 = vperm.xlu0 %1488, %v1285
    %v1490 = vpop.permute.xlu0 %1489
    %1492 = vset.pattern.permute.xlu0 2
    %1493 = vperm.xlu0 %1492, %v1292
    %v1494 = vpop.permute.xlu0 %1493
    %1496 = vset.pattern.permute.xlu0 2
    %1497 = vperm.xlu0 %1496, %v1299
    %v1498 = vpop.permute.xlu0 %1497
    %1500 = vset.pattern.permute.xlu0 2
    %1501 = vperm.xlu0 %1500, %v1306
    %v1502 = vpop.permute.xlu0 %1501
    %1504 = vset.pattern.permute.xlu0 2
    %1505 = vperm.xlu0 %1504, %v1313
    %v1506 = vpop.permute.xlu0 %1505
    %1508 = vset.pattern.permute.xlu0 2
    %1509 = vperm.xlu0 %1508, %v1320
    %v1510 = vpop.permute.xlu0 %1509
    %v1512 = vlaneseq
    %v1513 = vshrl.u32 %v1512, 7
    %v1514 = vsub.s32 0, %v1513
    %v1515 = vrot.slane %v1479, %v1514
    %v1516 = vmul.f32 %v1482, %v1515
    %v1517 = vmul.f32 %v1486, %v1515
    %v1518 = vmul.f32 %v1490, %v1515
    %v1519 = vmul.f32 %v1494, %v1515
    %v1520 = vmul.f32 %v1498, %v1515
    %v1521 = vmul.f32 %v1502, %v1515
    %v1522 = vmul.f32 %v1506, %v1515
    %v1523 = vmul.f32 %v1510, %v1515
    %v1532 = vrot.slane %v1517, 7
    %v1533 = vsel %vm1388, %v1532, %v1516
    %v1534 = vrot.slane %v1518, 6
    %v1535 = vsel %vm1391, %v1534, %v1533
    %v1536 = vrot.slane %v1519, 5
    %v1537 = vsel %vm1394, %v1536, %v1535
    %v1538 = vrot.slane %v1520, 4
    %v1539 = vsel %vm1397, %v1538, %v1537
    %v1540 = vrot.slane %v1521, 3
    %v1541 = vsel %vm1400, %v1540, %v1539
    %v1542 = vrot.slane %v1522, 2
    %v1543 = vsel %vm1403, %v1542, %v1541
    %v1544 = vrot.slane %v1523, 1
    %v1545 = vsel %vm1406, %v1544, %v1543
    %v1547 = vadd.f32 %v1478, %v1545
    %v1548 = vld [vmem:[#allocation2 + $0xbb] sm:$0x1]
    %1549 = vset.pattern.permute.xlu0 3
    %1550 = vperm.xlu0 %1549, %v1271
    %v1551 = vpop.permute.xlu0 %1550
    %1553 = vset.pattern.permute.xlu0 3
    %1554 = vperm.xlu0 %1553, %v1278
    %v1555 = vpop.permute.xlu0 %1554
    %1557 = vset.pattern.permute.xlu0 3
    %1558 = vperm.xlu0 %1557, %v1285
    %v1559 = vpop.permute.xlu0 %1558
    %1561 = vset.pattern.permute.xlu0 3
    %1562 = vperm.xlu0 %1561, %v1292
    %v1563 = vpop.permute.xlu0 %1562
    %1565 = vset.pattern.permute.xlu0 3
    %1566 = vperm.xlu0 %1565, %v1299
    %v1567 = vpop.permute.xlu0 %1566
    %1569 = vset.pattern.permute.xlu0 3
    %1570 = vperm.xlu0 %1569, %v1306
    %v1571 = vpop.permute.xlu0 %1570
    %1573 = vset.pattern.permute.xlu0 3
    %1574 = vperm.xlu0 %1573, %v1313
    %v1575 = vpop.permute.xlu0 %1574
    %1577 = vset.pattern.permute.xlu0 3
    %1578 = vperm.xlu0 %1577, %v1320
    %v1579 = vpop.permute.xlu0 %1578
    %v1581 = vlaneseq
    %v1582 = vshrl.u32 %v1581, 7
    %v1583 = vsub.s32 0, %v1582
    %v1584 = vrot.slane %v1548, %v1583
    %v1585 = vmul.f32 %v1551, %v1584
    %v1586 = vmul.f32 %v1555, %v1584
    %v1587 = vmul.f32 %v1559, %v1584
    %v1588 = vmul.f32 %v1563, %v1584
    %v1589 = vmul.f32 %v1567, %v1584
    %v1590 = vmul.f32 %v1571, %v1584
    %v1591 = vmul.f32 %v1575, %v1584
    %v1592 = vmul.f32 %v1579, %v1584
    %v1601 = vrot.slane %v1586, 7
    %v1602 = vsel %vm1388, %v1601, %v1585
    %v1603 = vrot.slane %v1587, 6
    %v1604 = vsel %vm1391, %v1603, %v1602
    %v1605 = vrot.slane %v1588, 5
    %v1606 = vsel %vm1394, %v1605, %v1604
    %v1607 = vrot.slane %v1589, 4
    %v1608 = vsel %vm1397, %v1607, %v1606
    %v1609 = vrot.slane %v1590, 3
    %v1610 = vsel %vm1400, %v1609, %v1608
    %v1611 = vrot.slane %v1591, 2
    %v1612 = vsel %vm1403, %v1611, %v1610
    %v1613 = vrot.slane %v1592, 1
    %v1614 = vsel %vm1406, %v1613, %v1612
    %v1616 = vadd.f32 %v1547, %v1614
    %v1617 = vld [vmem:[#allocation2 + $0xbc] sm:$0x1]
    %1618 = vset.pattern.permute.xlu0 4
    %1619 = vperm.xlu0 %1618, %v1271
    %v1620 = vpop.permute.xlu0 %1619
    %1622 = vset.pattern.permute.xlu0 4
    %1623 = vperm.xlu0 %1622, %v1278
    %v1624 = vpop.permute.xlu0 %1623
    %1626 = vset.pattern.permute.xlu0 4
    %1627 = vperm.xlu0 %1626, %v1285
    %v1628 = vpop.permute.xlu0 %1627
    %1630 = vset.pattern.permute.xlu0 4
    %1631 = vperm.xlu0 %1630, %v1292
    %v1632 = vpop.permute.xlu0 %1631
    %1634 = vset.pattern.permute.xlu0 4
    %1635 = vperm.xlu0 %1634, %v1299
    %v1636 = vpop.permute.xlu0 %1635
    %1638 = vset.pattern.permute.xlu0 4
    %1639 = vperm.xlu0 %1638, %v1306
    %v1640 = vpop.permute.xlu0 %1639
    %1642 = vset.pattern.permute.xlu0 4
    %1643 = vperm.xlu0 %1642, %v1313
    %v1644 = vpop.permute.xlu0 %1643
    %1646 = vset.pattern.permute.xlu0 4
    %1647 = vperm.xlu0 %1646, %v1320
    %v1648 = vpop.permute.xlu0 %1647
    %v1650 = vlaneseq
    %v1651 = vshrl.u32 %v1650, 7
    %v1652 = vsub.s32 0, %v1651
    %v1653 = vrot.slane %v1617, %v1652
    %v1654 = vmul.f32 %v1620, %v1653
    %v1655 = vmul.f32 %v1624, %v1653
    %v1656 = vmul.f32 %v1628, %v1653
    %v1657 = vmul.f32 %v1632, %v1653
    %v1658 = vmul.f32 %v1636, %v1653
    %v1659 = vmul.f32 %v1640, %v1653
    %v1660 = vmul.f32 %v1644, %v1653
    %v1661 = vmul.f32 %v1648, %v1653
    %v1670 = vrot.slane %v1655, 7
    %v1671 = vsel %vm1388, %v1670, %v1654
    %v1672 = vrot.slane %v1656, 6
    %v1673 = vsel %vm1391, %v1672, %v1671
    %v1674 = vrot.slane %v1657, 5
    %v1675 = vsel %vm1394, %v1674, %v1673
    %v1676 = vrot.slane %v1658, 4
    %v1677 = vsel %vm1397, %v1676, %v1675
    %v1678 = vrot.slane %v1659, 3
    %v1679 = vsel %vm1400, %v1678, %v1677
    %v1680 = vrot.slane %v1660, 2
    %v1681 = vsel %vm1403, %v1680, %v1679
    %v1682 = vrot.slane %v1661, 1
    %v1683 = vsel %vm1406, %v1682, %v1681
    %v1685 = vadd.f32 %v1616, %v1683
    %v1686 = vld [vmem:[#allocation2 + $0xbd] sm:$0x1]
    %1687 = vset.pattern.permute.xlu0 5
    %1688 = vperm.xlu0 %1687, %v1271
    %v1689 = vpop.permute.xlu0 %1688
    %1691 = vset.pattern.permute.xlu0 5
    %1692 = vperm.xlu0 %1691, %v1278
    %v1693 = vpop.permute.xlu0 %1692
    %1695 = vset.pattern.permute.xlu0 5
    %1696 = vperm.xlu0 %1695, %v1285
    %v1697 = vpop.permute.xlu0 %1696
    %1699 = vset.pattern.permute.xlu0 5
    %1700 = vperm.xlu0 %1699, %v1292
    %v1701 = vpop.permute.xlu0 %1700
    %1703 = vset.pattern.permute.xlu0 5
    %1704 = vperm.xlu0 %1703, %v1299
    %v1705 = vpop.permute.xlu0 %1704
    %1707 = vset.pattern.permute.xlu0 5
    %1708 = vperm.xlu0 %1707, %v1306
    %v1709 = vpop.permute.xlu0 %1708
    %1711 = vset.pattern.permute.xlu0 5
    %1712 = vperm.xlu0 %1711, %v1313
    %v1713 = vpop.permute.xlu0 %1712
    %1715 = vset.pattern.permute.xlu0 5
    %1716 = vperm.xlu0 %1715, %v1320
    %v1717 = vpop.permute.xlu0 %1716
    %v1719 = vlaneseq
    %v1720 = vshrl.u32 %v1719, 7
    %v1721 = vsub.s32 0, %v1720
    %v1722 = vrot.slane %v1686, %v1721
    %v1723 = vmul.f32 %v1689, %v1722
    %v1724 = vmul.f32 %v1693, %v1722
    %v1725 = vmul.f32 %v1697, %v1722
    %v1726 = vmul.f32 %v1701, %v1722
    %v1727 = vmul.f32 %v1705, %v1722
    %v1728 = vmul.f32 %v1709, %v1722
    %v1729 = vmul.f32 %v1713, %v1722
    %v1730 = vmul.f32 %v1717, %v1722
    %v1739 = vrot.slane %v1724, 7
    %v1740 = vsel %vm1388, %v1739, %v1723
    %v1741 = vrot.slane %v1725, 6
    %v1742 = vsel %vm1391, %v1741, %v1740
    %v1743 = vrot.slane %v1726, 5
    %v1744 = vsel %vm1394, %v1743, %v1742
    %v1745 = vrot.slane %v1727, 4
    %v1746 = vsel %vm1397, %v1745, %v1744
    %v1747 = vrot.slane %v1728, 3
    %v1748 = vsel %vm1400, %v1747, %v1746
    %v1749 = vrot.slane %v1729, 2
    %v1750 = vsel %vm1403, %v1749, %v1748
    %v1751 = vrot.slane %v1730, 1
    %v1752 = vsel %vm1406, %v1751, %v1750
    %v1754 = vadd.f32 %v1685, %v1752
    %v1755 = vmax.f32 %v1754, 0.0
    %1756 = vrot.lane.b32.xlu0 %v1755, 120
    %v1757 = vpop.permute.xlu0 %1756
    %v1758 = vadd.f32 %v1755, %v1757
    %1759 = vrot.lane.b32.xlu0 %v1755, 112
    %v1760 = vpop.permute.xlu0 %1759
    %v1761 = vadd.f32 %v1758, %v1760
    %v1762 = vld [vmem:[#allocation2 + $0xb2] sm:$0x1]
    %v1763 = vld [vmem:[#allocation2 + $0xc0] sm:$0x1]
    %1765 = vset.pattern.permute.xlu0 0
    %1766 = vperm.xlu0 %1765, %v1761
    %v1767 = vpop.permute.xlu0 %1766
    %v1769 = vlaneseq
    %v1770 = vshrl.u32 %v1769, 7
    %v1771 = vsub.s32 0, %v1770
    %v1772 = vrot.slane %v1763, %v1771
    %v1773 = vmul.f32 %v1767, %v1772
    %v1774 = vlaneseq
    %v1775 = vshrl.u32 %v1774, 7
    %v1776 = vsub.s32 0, %v1775
    %v1777 = vrot.slane %v1762, %v1776
    %v1778 = vadd.f32 %v1777, %v1773
    %v1779 = vld [vmem:[#allocation2 + $0xc1] sm:$0x1]
    %1780 = vset.pattern.permute.xlu0 1
    %1781 = vperm.xlu0 %1780, %v1761
    %v1782 = vpop.permute.xlu0 %1781
    %v1784 = vlaneseq
    %v1785 = vshrl.u32 %v1784, 7
    %v1786 = vsub.s32 0, %v1785
    %v1787 = vrot.slane %v1779, %v1786
    %v1788 = vmul.f32 %v1782, %v1787
    %v1789 = vadd.f32 %v1778, %v1788
    %v1790 = vld [vmem:[#allocation2 + $0xc2] sm:$0x1]
    %1791 = vset.pattern.permute.xlu0 2
    %1792 = vperm.xlu0 %1791, %v1761
    %v1793 = vpop.permute.xlu0 %1792
    %v1795 = vlaneseq
    %v1796 = vshrl.u32 %v1795, 7
    %v1797 = vsub.s32 0, %v1796
    %v1798 = vrot.slane %v1790, %v1797
    %v1799 = vmul.f32 %v1793, %v1798
    %v1800 = vadd.f32 %v1789, %v1799
    %v1801 = vld [vmem:[#allocation2 + $0xc3] sm:$0x1]
    %1802 = vset.pattern.permute.xlu0 3
    %1803 = vperm.xlu0 %1802, %v1761
    %v1804 = vpop.permute.xlu0 %1803
    %v1806 = vlaneseq
    %v1807 = vshrl.u32 %v1806, 7
    %v1808 = vsub.s32 0, %v1807
    %v1809 = vrot.slane %v1801, %v1808
    %v1810 = vmul.f32 %v1804, %v1809
    %v1811 = vadd.f32 %v1800, %v1810
    %v1812 = vld [vmem:[#allocation2 + $0xc4] sm:$0x1]
    %1813 = vset.pattern.permute.xlu0 4
    %1814 = vperm.xlu0 %1813, %v1761
    %v1815 = vpop.permute.xlu0 %1814
    %v1817 = vlaneseq
    %v1818 = vshrl.u32 %v1817, 7
    %v1819 = vsub.s32 0, %v1818
    %v1820 = vrot.slane %v1812, %v1819
    %v1821 = vmul.f32 %v1815, %v1820
    %v1822 = vadd.f32 %v1811, %v1821
    %v1823 = vld [vmem:[#allocation2 + $0xc5] sm:$0x1]
    %1824 = vset.pattern.permute.xlu0 5
    %1825 = vperm.xlu0 %1824, %v1761
    %v1826 = vpop.permute.xlu0 %1825
    %v1828 = vlaneseq
    %v1829 = vshrl.u32 %v1828, 7
    %v1830 = vsub.s32 0, %v1829
    %v1831 = vrot.slane %v1823, %v1830
    %v1832 = vmul.f32 %v1826, %v1831
    %v1833 = vadd.f32 %v1822, %v1832
    %v1834 = vld [vmem:[#allocation2 + $0xc6] sm:$0x1]
    %1835 = vset.pattern.permute.xlu0 6
    %1836 = vperm.xlu0 %1835, %v1761
    %v1837 = vpop.permute.xlu0 %1836
    %v1839 = vlaneseq
    %v1840 = vshrl.u32 %v1839, 7
    %v1841 = vsub.s32 0, %v1840
    %v1842 = vrot.slane %v1834, %v1841
    %v1843 = vmul.f32 %v1837, %v1842
    %v1844 = vadd.f32 %v1833, %v1843
    %v1845 = vld [vmem:[#allocation2 + $0xc7] sm:$0x1]
    %1846 = vset.pattern.permute.xlu0 7
    %1847 = vperm.xlu0 %1846, %v1761
    %v1848 = vpop.permute.xlu0 %1847
    %v1850 = vlaneseq
    %v1851 = vshrl.u32 %v1850, 7
    %v1852 = vsub.s32 0, %v1851
    %v1853 = vrot.slane %v1845, %v1852
    %v1854 = vmul.f32 %v1848, %v1853
    %v1855 = vadd.f32 %v1844, %v1854
    %v1856 = vmax.f32 %v1855, 0.0
    %1857 = vrot.lane.b32.xlu0 %v1856, 120
    %v1858 = vpop.permute.xlu0 %1857
    %v1859 = vadd.f32 %v1856, %v1858
    %1860 = vrot.lane.b32.xlu0 %v1856, 112
    %v1861 = vpop.permute.xlu0 %1860
    %v1862 = vadd.f32 %v1859, %v1861
    %v1863 = vld [vmem:[#allocation2 + $0xb3] sm:$0x1]
    %v1864 = vld [vmem:[#allocation2 + $0xc8] sm:$0x1]
    %1866 = vset.pattern.permute.xlu0 0
    %1867 = vperm.xlu0 %1866, %v1862
    %v1868 = vpop.permute.xlu0 %1867
    %v1870 = vlaneseq
    %v1871 = vshrl.u32 %v1870, 7
    %v1872 = vsub.s32 0, %v1871
    %v1873 = vrot.slane %v1864, %v1872
    %v1874 = vmul.f32 %v1868, %v1873
    %v1875 = vlaneseq
    %v1876 = vshrl.u32 %v1875, 7
    %v1877 = vsub.s32 0, %v1876
    %v1878 = vrot.slane %v1863, %v1877
    %v1879 = vadd.f32 %v1878, %v1874
    %v1880 = vld [vmem:[#allocation2 + $0xc9] sm:$0x1]
    %1881 = vset.pattern.permute.xlu0 1
    %1882 = vperm.xlu0 %1881, %v1862
    %v1883 = vpop.permute.xlu0 %1882
    %v1885 = vlaneseq
    %v1886 = vshrl.u32 %v1885, 7
    %v1887 = vsub.s32 0, %v1886
    %v1888 = vrot.slane %v1880, %v1887
    %v1889 = vmul.f32 %v1883, %v1888
    %v1890 = vadd.f32 %v1879, %v1889
    %v1891 = vld [vmem:[#allocation2 + $0xca] sm:$0x1]
    %1892 = vset.pattern.permute.xlu0 2
    %1893 = vperm.xlu0 %1892, %v1862
    %v1894 = vpop.permute.xlu0 %1893
    %v1896 = vlaneseq
    %v1897 = vshrl.u32 %v1896, 7
    %v1898 = vsub.s32 0, %v1897
    %v1899 = vrot.slane %v1891, %v1898
    %v1900 = vmul.f32 %v1894, %v1899
    %v1901 = vadd.f32 %v1890, %v1900
    %v1902 = vld [vmem:[#allocation2 + $0xcb] sm:$0x1]
    %1903 = vset.pattern.permute.xlu0 3
    %1904 = vperm.xlu0 %1903, %v1862
    %v1905 = vpop.permute.xlu0 %1904
    %v1907 = vlaneseq
    %v1908 = vshrl.u32 %v1907, 7
    %v1909 = vsub.s32 0, %v1908
    %v1910 = vrot.slane %v1902, %v1909
    %v1911 = vmul.f32 %v1905, %v1910
    %v1912 = vadd.f32 %v1901, %v1911
    %v1913 = vld [vmem:[#allocation2 + $0xcc] sm:$0x1]
    %1914 = vset.pattern.permute.xlu0 4
    %1915 = vperm.xlu0 %1914, %v1862
    %v1916 = vpop.permute.xlu0 %1915
    %v1918 = vlaneseq
    %v1919 = vshrl.u32 %v1918, 7
    %v1920 = vsub.s32 0, %v1919
    %v1921 = vrot.slane %v1913, %v1920
    %v1922 = vmul.f32 %v1916, %v1921
    %v1923 = vadd.f32 %v1912, %v1922
    %v1924 = vld [vmem:[#allocation2 + $0xcd] sm:$0x1]
    %1925 = vset.pattern.permute.xlu0 5
    %1926 = vperm.xlu0 %1925, %v1862
    %v1927 = vpop.permute.xlu0 %1926
    %v1929 = vlaneseq
    %v1930 = vshrl.u32 %v1929, 7
    %v1931 = vsub.s32 0, %v1930
    %v1932 = vrot.slane %v1924, %v1931
    %v1933 = vmul.f32 %v1927, %v1932
    %v1934 = vadd.f32 %v1923, %v1933
    %v1935 = vld [vmem:[#allocation2 + $0xce] sm:$0x1]
    %1936 = vset.pattern.permute.xlu0 6
    %1937 = vperm.xlu0 %1936, %v1862
    %v1938 = vpop.permute.xlu0 %1937
    %v1940 = vlaneseq
    %v1941 = vshrl.u32 %v1940, 7
    %v1942 = vsub.s32 0, %v1941
    %v1943 = vrot.slane %v1935, %v1942
    %v1944 = vmul.f32 %v1938, %v1943
    %v1945 = vadd.f32 %v1934, %v1944
    %v1946 = vld [vmem:[#allocation2 + $0xcf] sm:$0x1]
    %1947 = vset.pattern.permute.xlu0 7
    %1948 = vperm.xlu0 %1947, %v1862
    %v1949 = vpop.permute.xlu0 %1948
    %v1951 = vlaneseq
    %v1952 = vshrl.u32 %v1951, 7
    %v1953 = vsub.s32 0, %v1952
    %v1954 = vrot.slane %v1946, %v1953
    %v1955 = vmul.f32 %v1949, %v1954
    %v1956 = vadd.f32 %v1945, %v1955
    %1957 = vst [vmem:[#allocation5] sm:$0xff] %v1956
    // Predicated region
    $region14: #{tpu_custom_call.1} parent=1 // pred_check
      _
    $region15: #{tpu_custom_call.1} parent=1 // pred_check_branch
      %1959 = sbr.rel (0) target = $region17
    $region16: #{tpu_custom_call.1} parent=1 // pred_region
      %s1961 = ssub.s32 128, 128
      %1962 = vsyncadd [#allocation4], %s1961
      %s1964 = sshll.u32 [#allocation5], 4
      %s1965 = int_to_ptr.vmem [resolvable:$true] %s1964
      %1967 = dma.vmem_to_hbm [thread:$0]  %s1965, 128, %s2, [#allocation4]
    $region17: #{tpu_custom_call.1} parent=1 // pred_fallthru
      _
    // Predicated region
    $region18: #{tpu_custom_call.1} parent=1 // pred_check
      _
    $region19: #{tpu_custom_call.1} parent=1 // pred_check_branch
      %1969 = sbr.rel (0) target = $region21
    $region20: #{tpu_custom_call.1} parent=1 // pred_region
      %1970 = dma.done [#allocation4], 128
    $region21: #{tpu_custom_call.1} parent=1 // pred_fallthru
      _
    %1971 = vsyncpa [#allocation3], 1
    %1972 = vsyncpa [#allocation4], 1

</llo_original>
